<compile_context>
chip_gen: v7x
topology: tpu7x:2x2x1
jax: 0.10.0
libtpu: 0.0.40
codegen_flags: <defaults>
</compile_context>

<pallas_src>
import functools

import jax
import jax.numpy as jnp
from jax import lax
from jax.experimental import pallas as pl
from jax.experimental.pallas import tpu as pltpu

BN_EPS = 1e-5   # nn.BatchNorm1d default
LANE = 128      # TPU lane width


def _round_up(n: int, m: int) -> int:
    return (n + m - 1) // m * m


def _vmem_spec():
    return pl.BlockSpec(memory_space=pltpu.MemorySpace.VMEM)


# ----------------------------------------------------------------------------
# Kernel 1: backbone conv as im2col matmul + bias + ReLU (both views stacked).
#   cols: (2B*OH*OW, C*9) f32, w: (C*9, OC_pad) bf16, b: (1, OC_pad) f32.
# Output is bf16 and lane-dense (OC zero-padded to 128 lanes).
# ----------------------------------------------------------------------------
def _conv_kernel(cols_ref, w_ref, b_ref, o_ref):
    x = cols_ref[...].astype(jnp.bfloat16)
    y = jnp.dot(x, w_ref[...], preferred_element_type=jnp.float32)
    y = jnp.maximum(y + b_ref[...], 0.0)
    o_ref[...] = y.astype(o_ref.dtype)


# ----------------------------------------------------------------------------
# Kernel 2: fused encoder (3x linear+BN[+ReLU]) + predictor (linear+BN+ReLU,
# linear+bias) for BOTH views.  All intermediates stay in VMEM/vregs; BN uses
# per-view batch statistics (training mode, biased variance) like PyTorch.
# ----------------------------------------------------------------------------
def _mlp_kernel(f_ref, ew1_ref, ew2_ref, ew3_ref, pw1_ref, pw2_ref,
                ebn_ref, pbn_ref, pb2_ref, z_ref, p_ref, *, n_views):
    def mm(a, w_ref):
        # bf16 MXU inputs, f32 accumulate; epilogue math stays f32 (v5e-safe).
        return jnp.dot(a.astype(jnp.bfloat16), w_ref[...],
                       preferred_element_type=jnp.float32)

    def bn(y, g, b, relu):
        m = jnp.mean(y, axis=0, keepdims=True)
        var = jnp.mean((y - m) * (y - m), axis=0, keepdims=True)
        out = (y - m) * lax.rsqrt(var + BN_EPS) * g + b
        return jnp.maximum(out, 0.0) if relu else out

    ebn = ebn_ref[...]                       # (6, DP) rows: g1,b1,g2,b2,g3,b3
    pbn = pbn_ref[...]                       # (2, PP) rows: g1,b1
    pb2 = pb2_ref[...]                       # (1, DP)

    for v in range(n_views):                 # static unroll; BN stats per view
        f = f_ref[v]                         # (B, FEAT_DIM), bf16
        h = bn(mm(f, ew1_ref), ebn[0:1], ebn[1:2], relu=True)    # encoder L1
        h = bn(mm(h, ew2_ref), ebn[2:3], ebn[3:4], relu=True)    # encoder L2
        z = bn(mm(h, ew3_ref), ebn[4:5], ebn[5:6], relu=False)   # encoder L3
        hp = bn(mm(z, pw1_ref), pbn[0:1], pbn[1:2], relu=True)   # predictor L1
        p = mm(hp, pw2_ref) + pb2                                 # predictor L2
        z_ref[v] = z
        p_ref[v] = p


# ----------------------------------------------------------------------------
# Wrappers
# ----------------------------------------------------------------------------
def _backbone(x, wc, bc, *, oc):
    """Conv2d(k=3,s=2,p=1)+ReLU on the stacked (2B,C,H,W) input. Returns
    features as (2, B, OH*OW*OC) in NHWC-flatten order; the permutation to the
    module's NCHW-flatten order is folded into the encoder's first weights."""
    B2, C, H, W = x.shape
    OH, OW = (H + 1) // 2, (W + 1) // 2
    S, K = OH * OW, C * 9
    # im2col patch extraction (layout glue); channel order is (C, KH, KW)-major,
    # matching conv_w.reshape(OC, C*9).
    patches = lax.conv_general_dilated_patches(
        x, filter_shape=(3, 3), window_strides=(2, 2),
        padding=((1, 1), (1, 1)),
        dimension_numbers=("NCHW", "OIHW", "NCHW"))           # (B2, C*9, OH, OW)
    cols = patches.reshape(B2, K, S).transpose(0, 2, 1).reshape(B2 * S, K)
    out = pl.pallas_call(
        _conv_kernel,
        in_specs=[_vmem_spec()] * 3,
        out_specs=_vmem_spec(),
        out_shape=jax.ShapeDtypeStruct((B2 * S, wc.shape[1]), jnp.bfloat16),
    )(cols, wc, bc)
    return out[:, :oc].reshape(2, B2 // 2, S * oc)


def _mlp(feats, prep):
    n_views, B, _ = feats.shape
    dp = prep["ew1"].shape[1]
    return pl.pallas_call(
        functools.partial(_mlp_kernel, n_views=n_views),
        in_specs=[_vmem_spec()] * 9,
        out_specs=(_vmem_spec(), _vmem_spec()),
        out_shape=(jax.ShapeDtypeStruct((n_views, B, dp), jnp.float32),
                   jax.ShapeDtypeStruct((n_views, B, dp), jnp.float32)),
    )(feats, prep["ew1"], prep["ew2"], prep["ew3"], prep["pw1"], prep["pw2"],
      prep["enc_bn"], prep["pred_bn"], prep["pred_b2"])


def simsiam_forward(prep, x0, x1, *, oc, dim):
    x = jnp.concatenate([x0, x1], axis=0)                     # (2B, C, H, W)
    feats = _backbone(x, prep["conv_w"], prep["conv_b"], oc=oc)
    z, p = _mlp(feats, prep)                                   # (2, B, DP) each
    z0, p0 = z[0, :, :dim], p[0, :, :dim]
    z1, p1 = z[1, :, :dim], p[1, :, :dim]
    return ((p0, lax.stop_gradient(z0)), (p1, lax.stop_gradient(z1)))


# ----------------------------------------------------------------------------
# Parameters: module-shaped init + one-time host-side packing for the kernels.
# ----------------------------------------------------------------------------
def init_params(key, in_ch, feat_ch, feat_dim, dim, pred_dim):
    ks = jax.random.split(key, 8)
    scale = 0.05

    def nrm(k, shape):
        return (scale * jax.random.normal(k, shape)).astype(jnp.float32)

    return {
        "conv_w": nrm(ks[0], (feat_ch, in_ch, 3, 3)),
        "conv_b": jnp.zeros((feat_ch,), jnp.float32),
        "enc": {
            "w1": nrm(ks[1], (feat_dim, dim)),
            "g1": jnp.ones((1, dim), jnp.float32), "b1": jnp.zeros((1, dim), jnp.float32),
            "w2": nrm(ks[2], (dim, dim)),
            "g2": jnp.ones((1, dim), jnp.float32), "b2": jnp.zeros((1, dim), jnp.float32),
            "w3": nrm(ks[3], (dim, dim)),
            "g3": jnp.ones((1, dim), jnp.float32), "b3": jnp.zeros((1, dim), jnp.float32),
        },
        "pred": {
            "w1": nrm(ks[4], (dim, pred_dim)),
            "g1": jnp.ones((1, pred_dim), jnp.float32), "b1": jnp.zeros((1, pred_dim), jnp.float32),
            "w2": nrm(ks[5], (pred_dim, dim)),
            "b2": jnp.zeros((1, dim), jnp.float32),
        },
    }


def prepare_params(params, *, oh, ow, dim, pred_dim):
    """One-time packing: pad feature dims to 128 lanes, cast matmul weights to
    bf16, fold the NCHW-flatten permutation into enc.w1, pack BN gamma/beta.
    Zero padding keeps padded lanes exactly 0 through the whole network."""
    OC, C = params["conv_w"].shape[0], params["conv_w"].shape[1]
    S = oh * ow
    DP = _round_up(dim, LANE)
    PP = _round_up(pred_dim, LANE)
    OCP = _round_up(OC, LANE)

    def pad2(a, rows, cols):
        return jnp.pad(a, ((0, rows - a.shape[0]), (0, cols - a.shape[1])))

    enc, pred = params["enc"], params["pred"]
    # Conv weight as a (C*9, OC) matmul matrix ((C,KH,KW)-major rows), padded.
    wc = pad2(params["conv_w"].reshape(OC, C * 9).T, C * 9, OCP)
    # Encoder w1 rows permuted from NCHW-flatten order (c*S + s) to the NHWC
    # order (s*OC + c) the backbone kernel produces -> identical math.
    w1 = enc["w1"].reshape(OC, S, dim).transpose(1, 0, 2).reshape(S * OC, dim)

    return {
        "conv_w": wc.astype(jnp.bfloat16),
        "conv_b": pad2(params["conv_b"].reshape(1, OC), 1, OCP),
        "ew1": pad2(w1, S * OC, DP).astype(jnp.bfloat16),
        "ew2": pad2(enc["w2"], DP, DP).astype(jnp.bfloat16),
        "ew3": pad2(enc["w3"], DP, DP).astype(jnp.bfloat16),
        "pw1": pad2(pred["w1"], DP, PP).astype(jnp.bfloat16),
        "pw2": pad2(pred["w2"], PP, DP).astype(jnp.bfloat16),
        "enc_bn": jnp.concatenate(
            [pad2(enc[k], 1, DP) for k in ("g1", "b1", "g2", "b2", "g3", "b3")], axis=0),
        "pred_bn": jnp.concatenate(
            [pad2(pred[k], 1, PP) for k in ("g1", "b1")], axis=0),
        "pred_b2": pad2(pred["b2"], 1, DP),
    }


if __name__ == "__main__":
    # Small shapes consistent with the module's forward: two image views.
    B, C, H, W = 2, 4, 16, 16
    FEAT_CH = 8                                  # backbone output channels
    OH, OW = (H + 1) // 2, (W + 1) // 2
    FEAT_DIM = FEAT_CH * OH * OW                 # flattened backbone features = 512
    DIM, PRED_DIM = 32, 16                       # scaled-down SimSiam dims

    key = jax.random.PRNGKey(0)
    k_x0, k_x1, k_p = jax.random.split(key, 3)
    x0 = jax.random.normal(k_x0, (B, C, H, W), dtype=jnp.float32)
    x1 = jax.random.normal(k_x1, (B, C, H, W), dtype=jnp.float32)

    params = init_params(k_p, C, FEAT_CH, FEAT_DIM, DIM, PRED_DIM)
    prep = prepare_params(params, oh=OH, ow=OW, dim=DIM, pred_dim=PRED_DIM)

    fwd = jax.jit(functools.partial(simsiam_forward, oc=FEAT_CH, dim=DIM))
    ((p0, z0), (p1, z1)) = fwd(prep, x0, x1)
    jax.block_until_ready((p0, z0, p1, z1))

    assert p0.shape == (B, DIM) and z0.shape == (B, DIM)
    assert p1.shape == (B, DIM) and z1.shape == (B, DIM)
    assert bool(jnp.all(jnp.isfinite(p0)) & jnp.all(jnp.isfinite(z0))
                & jnp.all(jnp.isfinite(p1)) & jnp.all(jnp.isfinite(z1)))
    print("KERNEL_OK")
</pallas_src>

<mosaic_0001>
module attributes {stable_mosaic.version = 11 : i64} {
  func.func @_conv_kernel(%arg0: memref<256x36xf32, #tpu.memory_space<vmem>>, %arg1: memref<36x128xbf16, #tpu.memory_space<vmem>>, %arg2: memref<1x128xf32, #tpu.memory_space<vmem>>, %arg3: memref<256x128xbf16, #tpu.memory_space<vmem>>) attributes {dimension_semantics = [], scalar_prefetch = 0 : i64, scratch_operands = 0 : i64, tpu.core_type = #tpu.core_type<tc>} {
    %c0 = arith.constant 0 : index
    %c0_0 = arith.constant 0 : index
    %0 = vector.load %arg0[%c0, %c0_0] : memref<256x36xf32, #tpu.memory_space<vmem>>, vector<256x36xf32>
    %1 = arith.truncf %0 : vector<256x36xf32> to vector<256x36xbf16>
    %c0_1 = arith.constant 0 : index
    %c0_2 = arith.constant 0 : index
    %2 = vector.load %arg1[%c0_1, %c0_2] : memref<36x128xbf16, #tpu.memory_space<vmem>>, vector<36x128xbf16>
    %cst = arith.constant dense<0.000000e+00> : vector<256x128xf32>
    %3 = tpu.matmul %1, %2, %cst {dimension_numbers = #tpu.dot_dimension_numbers<[1], [0], [0], [1], [0, 0, 1, 1], [], []>} : vector<256x36xbf16>, vector<36x128xbf16>, vector<256x128xf32> -> vector<256x128xf32>
    %c0_3 = arith.constant 0 : index
    %c0_4 = arith.constant 0 : index
    %4 = vector.load %arg2[%c0_3, %c0_4] : memref<1x128xf32, #tpu.memory_space<vmem>>, vector<1x128xf32>
    %5 = vector.broadcast %4 : vector<1x128xf32> to vector<256x128xf32>
    %6 = arith.addf %3, %5 : vector<256x128xf32>
    %cst_5 = arith.constant 0.000000e+00 : f32
    %7 = vector.broadcast %cst_5 : f32 to vector<256x128xf32>
    %8 = arith.maximumf %6, %7 : vector<256x128xf32>
    %9 = arith.truncf %8 : vector<256x128xf32> to vector<256x128xbf16>
    %c0_6 = arith.constant 0 : index
    %c0_7 = arith.constant 0 : index
    %10 = vector.load %arg3[%c0_6, %c0_7] : memref<256x128xbf16, #tpu.memory_space<vmem>>, vector<256x128xbf16>
    tpu.vector_store %arg3[%c0_6, %c0_7], %9 {strides = array<i32>} : memref<256x128xbf16, #tpu.memory_space<vmem>>, vector<256x128xbf16>,
    return
  }
}

module attributes {stable_mosaic.version = 11 : i64} {
  func.func @_mlp_kernel(%arg0: memref<2x2x512xbf16, #tpu.memory_space<vmem>>, %arg1: memref<512x128xbf16, #tpu.memory_space<vmem>>, %arg2: memref<128x128xbf16, #tpu.memory_space<vmem>>, %arg3: memref<128x128xbf16, #tpu.memory_space<vmem>>, %arg4: memref<128x128xbf16, #tpu.memory_space<vmem>>, %arg5: memref<128x128xbf16, #tpu.memory_space<vmem>>, %arg6: memref<6x128xf32, #tpu.memory_space<vmem>>, %arg7: memref<2x128xf32, #tpu.memory_space<vmem>>, %arg8: memref<1x128xf32, #tpu.memory_space<vmem>>, %arg9: memref<2x2x128xf32, #tpu.memory_space<vmem>>, %arg10: memref<2x2x128xf32, #tpu.memory_space<vmem>>) attributes {dimension_semantics = [], scalar_prefetch = 0 : i64, scratch_operands = 0 : i64, tpu.core_type = #tpu.core_type<tc>} {
    %c0 = arith.constant 0 : index
    %c0_0 = arith.constant 0 : index
    %0 = vector.load %arg6[%c0, %c0_0] : memref<6x128xf32, #tpu.memory_space<vmem>>, vector<6x128xf32>
    %c0_1 = arith.constant 0 : index
    %c0_2 = arith.constant 0 : index
    %1 = vector.load %arg7[%c0_1, %c0_2] : memref<2x128xf32, #tpu.memory_space<vmem>>, vector<2x128xf32>
    %c0_3 = arith.constant 0 : index
    %c0_4 = arith.constant 0 : index
    %2 = vector.load %arg8[%c0_3, %c0_4] : memref<1x128xf32, #tpu.memory_space<vmem>>, vector<1x128xf32>
    %c0_5 = arith.constant 0 : index
    %c0_6 = arith.constant 0 : index
    %c0_7 = arith.constant 0 : index
    %3 = vector.load %arg0[%c0_5, %c0_6, %c0_7] : memref<2x2x512xbf16, #tpu.memory_space<vmem>>, vector<1x2x512xbf16>
    %4 = vector.shape_cast %3 : vector<1x2x512xbf16> to vector<2x512xbf16>
    %c0_8 = arith.constant 0 : index
    %c0_9 = arith.constant 0 : index
    %5 = vector.load %arg1[%c0_8, %c0_9] : memref<512x128xbf16, #tpu.memory_space<vmem>>, vector<512x128xbf16>
    %cst = arith.constant dense<0.000000e+00> : vector<2x128xf32>
    %6 = tpu.matmul %4, %5, %cst {dimension_numbers = #tpu.dot_dimension_numbers<[1], [0], [0], [1], [0, 0, 1, 1], [], []>} : vector<2x512xbf16>, vector<512x128xbf16>, vector<2x128xf32> -> vector<2x128xf32>
    %7 = vector.extract_strided_slice %0 {offsets = [0, 0], sizes = [1, 128], strides = [1, 1]} : vector<6x128xf32> to vector<1x128xf32>
    %8 = vector.extract_strided_slice %0 {offsets = [1, 0], sizes = [1, 128], strides = [1, 1]} : vector<6x128xf32> to vector<1x128xf32>
    %cst_10 = arith.constant dense<0.000000e+00> : vector<128xf32>
    %9 = vector.multi_reduction <add>, %6, %cst_10 [0] : vector<2x128xf32> to vector<128xf32>
    %10 = vector.shape_cast %9 : vector<128xf32> to vector<1x128xf32>
    %cst_11 = arith.constant 2.000000e+00 : f32
    %11 = vector.broadcast %cst_11 : f32 to vector<1x128xf32>
    %12 = arith.divf %10, %11 : vector<1x128xf32>
    %13 = vector.broadcast %12 : vector<1x128xf32> to vector<2x128xf32>
    %14 = arith.subf %6, %13 : vector<2x128xf32>
    %15 = vector.broadcast %12 : vector<1x128xf32> to vector<2x128xf32>
    %16 = arith.subf %6, %15 : vector<2x128xf32>
    %17 = arith.mulf %14, %16 : vector<2x128xf32>
    %cst_12 = arith.constant dense<0.000000e+00> : vector<128xf32>
    %18 = vector.multi_reduction <add>, %17, %cst_12 [0] : vector<2x128xf32> to vector<128xf32>
    %19 = vector.shape_cast %18 : vector<128xf32> to vector<1x128xf32>
    %cst_13 = arith.constant 2.000000e+00 : f32
    %20 = vector.broadcast %cst_13 : f32 to vector<1x128xf32>
    %21 = arith.divf %19, %20 : vector<1x128xf32>
    %22 = vector.broadcast %12 : vector<1x128xf32> to vector<2x128xf32>
    %23 = arith.subf %6, %22 : vector<2x128xf32>
    %cst_14 = arith.constant 9.99999974E-6 : f32
    %24 = vector.broadcast %cst_14 : f32 to vector<1x128xf32>
    %25 = arith.addf %21, %24 : vector<1x128xf32>
    %26 = math.rsqrt %25 : vector<1x128xf32>
    %27 = vector.broadcast %26 : vector<1x128xf32> to vector<2x128xf32>
    %28 = arith.mulf %23, %27 : vector<2x128xf32>
    %29 = vector.broadcast %7 : vector<1x128xf32> to vector<2x128xf32>
    %30 = arith.mulf %28, %29 : vector<2x128xf32>
    %31 = vector.broadcast %8 : vector<1x128xf32> to vector<2x128xf32>
    %32 = arith.addf %30, %31 : vector<2x128xf32>
    %cst_15 = arith.constant 0.000000e+00 : f32
    %33 = vector.broadcast %cst_15 : f32 to vector<2x128xf32>
    %34 = arith.maximumf %32, %33 : vector<2x128xf32>
    %35 = arith.truncf %34 : vector<2x128xf32> to vector<2x128xbf16>
    %c0_16 = arith.constant 0 : index
    %c0_17 = arith.constant 0 : index
    %36 = vector.load %arg2[%c0_16, %c0_17] : memref<128x128xbf16, #tpu.memory_space<vmem>>, vector<128x128xbf16>
    %cst_18 = arith.constant dense<0.000000e+00> : vector<2x128xf32>
    %37 = tpu.matmul %35, %36, %cst_18 {dimension_numbers = #tpu.dot_dimension_numbers<[1], [0], [0], [1], [0, 0, 1, 1], [], []>} : vector<2x128xbf16>, vector<128x128xbf16>, vector<2x128xf32> -> vector<2x128xf32>
    %38 = vector.extract_strided_slice %0 {offsets = [2, 0], sizes = [1, 128], strides = [1, 1]} : vector<6x128xf32> to vector<1x128xf32>
    %39 = vector.extract_strided_slice %0 {offsets = [3, 0], sizes = [1, 128], strides = [1, 1]} : vector<6x128xf32> to vector<1x128xf32>
    %cst_19 = arith.constant dense<0.000000e+00> : vector<128xf32>
    %40 = vector.multi_reduction <add>, %37, %cst_19 [0] : vector<2x128xf32> to vector<128xf32>
    %41 = vector.shape_cast %40 : vector<128xf32> to vector<1x128xf32>
    %cst_20 = arith.constant 2.000000e+00 : f32
    %42 = vector.broadcast %cst_20 : f32 to vector<1x128xf32>
    %43 = arith.divf %41, %42 : vector<1x128xf32>
    %44 = vector.broadcast %43 : vector<1x128xf32> to vector<2x128xf32>
    %45 = arith.subf %37, %44 : vector<2x128xf32>
    %46 = vector.broadcast %43 : vector<1x128xf32> to vector<2x128xf32>
    %47 = arith.subf %37, %46 : vector<2x128xf32>
    %48 = arith.mulf %45, %47 : vector<2x128xf32>
    %cst_21 = arith.constant dense<0.000000e+00> : vector<128xf32>
    %49 = vector.multi_reduction <add>, %48, %cst_21 [0] : vector<2x128xf32> to vector<128xf32>
    %50 = vector.shape_cast %49 : vector<128xf32> to vector<1x128xf32>
    %cst_22 = arith.constant 2.000000e+00 : f32
    %51 = vector.broadcast %cst_22 : f32 to vector<1x128xf32>
    %52 = arith.divf %50, %51 : vector<1x128xf32>
    %53 = vector.broadcast %43 : vector<1x128xf32> to vector<2x128xf32>
    %54 = arith.subf %37, %53 : vector<2x128xf32>
    %cst_23 = arith.constant 9.99999974E-6 : f32
    %55 = vector.broadcast %cst_23 : f32 to vector<1x128xf32>
    %56 = arith.addf %52, %55 : vector<1x128xf32>
    %57 = math.rsqrt %56 : vector<1x128xf32>
    %58 = vector.broadcast %57 : vector<1x128xf32> to vector<2x128xf32>
    %59 = arith.mulf %54, %58 : vector<2x128xf32>
    %60 = vector.broadcast %38 : vector<1x128xf32> to vector<2x128xf32>
    %61 = arith.mulf %59, %60 : vector<2x128xf32>
    %62 = vector.broadcast %39 : vector<1x128xf32> to vector<2x128xf32>
    %63 = arith.addf %61, %62 : vector<2x128xf32>
    %cst_24 = arith.constant 0.000000e+00 : f32
    %64 = vector.broadcast %cst_24 : f32 to vector<2x128xf32>
    %65 = arith.maximumf %63, %64 : vector<2x128xf32>
    %66 = arith.truncf %65 : vector<2x128xf32> to vector<2x128xbf16>
    %c0_25 = arith.constant 0 : index
    %c0_26 = arith.constant 0 : index
    %67 = vector.load %arg3[%c0_25, %c0_26] : memref<128x128xbf16, #tpu.memory_space<vmem>>, vector<128x128xbf16>
    %cst_27 = arith.constant dense<0.000000e+00> : vector<2x128xf32>
    %68 = tpu.matmul %66, %67, %cst_27 {dimension_numbers = #tpu.dot_dimension_numbers<[1], [0], [0], [1], [0, 0, 1, 1], [], []>} : vector<2x128xbf16>, vector<128x128xbf16>, vector<2x128xf32> -> vector<2x128xf32>
    %69 = vector.extract_strided_slice %0 {offsets = [4, 0], sizes = [1, 128], strides = [1, 1]} : vector<6x128xf32> to vector<1x128xf32>
    %70 = vector.extract_strided_slice %0 {offsets = [5, 0], sizes = [1, 128], strides = [1, 1]} : vector<6x128xf32> to vector<1x128xf32>
    %cst_28 = arith.constant dense<0.000000e+00> : vector<128xf32>
    %71 = vector.multi_reduction <add>, %68, %cst_28 [0] : vector<2x128xf32> to vector<128xf32>
    %72 = vector.shape_cast %71 : vector<128xf32> to vector<1x128xf32>
    %cst_29 = arith.constant 2.000000e+00 : f32
    %73 = vector.broadcast %cst_29 : f32 to vector<1x128xf32>
    %74 = arith.divf %72, %73 : vector<1x128xf32>
    %75 = vector.broadcast %74 : vector<1x128xf32> to vector<2x128xf32>
    %76 = arith.subf %68, %75 : vector<2x128xf32>
    %77 = vector.broadcast %74 : vector<1x128xf32> to vector<2x128xf32>
    %78 = arith.subf %68, %77 : vector<2x128xf32>
    %79 = arith.mulf %76, %78 : vector<2x128xf32>
    %cst_30 = arith.constant dense<0.000000e+00> : vector<128xf32>
    %80 = vector.multi_reduction <add>, %79, %cst_30 [0] : vector<2x128xf32> to vector<128xf32>
    %81 = vector.shape_cast %80 : vector<128xf32> to vector<1x128xf32>
    %cst_31 = arith.constant 2.000000e+00 : f32
    %82 = vector.broadcast %cst_31 : f32 to vector<1x128xf32>
    %83 = arith.divf %81, %82 : vector<1x128xf32>
    %84 = vector.broadcast %74 : vector<1x128xf32> to vector<2x128xf32>
    %85 = arith.subf %68, %84 : vector<2x128xf32>
    %cst_32 = arith.constant 9.99999974E-6 : f32
    %86 = vector.broadcast %cst_32 : f32 to vector<1x128xf32>
    %87 = arith.addf %83, %86 : vector<1x128xf32>
    %88 = math.rsqrt %87 : vector<1x128xf32>
    %89 = vector.broadcast %88 : vector<1x128xf32> to vector<2x128xf32>
    %90 = arith.mulf %85, %89 : vector<2x128xf32>
    %91 = vector.broadcast %69 : vector<1x128xf32> to vector<2x128xf32>
    %92 = arith.mulf %90, %91 : vector<2x128xf32>
    %93 = vector.broadcast %70 : vector<1x128xf32> to vector<2x128xf32>
    %94 = arith.addf %92, %93 : vector<2x128xf32>
    %95 = arith.truncf %94 : vector<2x128xf32> to vector<2x128xbf16>
    %c0_33 = arith.constant 0 : index
    %c0_34 = arith.constant 0 : index
    %96 = vector.load %arg4[%c0_33, %c0_34] : memref<128x128xbf16, #tpu.memory_space<vmem>>, vector<128x128xbf16>
    %cst_35 = arith.constant dense<0.000000e+00> : vector<2x128xf32>
    %97 = tpu.matmul %95, %96, %cst_35 {dimension_numbers = #tpu.dot_dimension_numbers<[1], [0], [0], [1], [0, 0, 1, 1], [], []>} : vector<2x128xbf16>, vector<128x128xbf16>, vector<2x128xf32> -> vector<2x128xf32>
    %98 = vector.extract_strided_slice %1 {offsets = [0, 0], sizes = [1, 128], strides = [1, 1]} : vector<2x128xf32> to vector<1x128xf32>
    %99 = vector.extract_strided_slice %1 {offsets = [1, 0], sizes = [1, 128], strides = [1, 1]} : vector<2x128xf32> to vector<1x128xf32>
    %cst_36 = arith.constant dense<0.000000e+00> : vector<128xf32>
    %100 = vector.multi_reduction <add>, %97, %cst_36 [0] : vector<2x128xf32> to vector<128xf32>
    %101 = vector.shape_cast %100 : vector<128xf32> to vector<1x128xf32>
    %cst_37 = arith.constant 2.000000e+00 : f32
    %102 = vector.broadcast %cst_37 : f32 to vector<1x128xf32>
    %103 = arith.divf %101, %102 : vector<1x128xf32>
    %104 = vector.broadcast %103 : vector<1x128xf32> to vector<2x128xf32>
    %105 = arith.subf %97, %104 : vector<2x128xf32>
    %106 = vector.broadcast %103 : vector<1x128xf32> to vector<2x128xf32>
    %107 = arith.subf %97, %106 : vector<2x128xf32>
    %108 = arith.mulf %105, %107 : vector<2x128xf32>
    %cst_38 = arith.constant dense<0.000000e+00> : vector<128xf32>
    %109 = vector.multi_reduction <add>, %108, %cst_38 [0] : vector<2x128xf32> to vector<128xf32>
    %110 = vector.shape_cast %109 : vector<128xf32> to vector<1x128xf32>
    %cst_39 = arith.constant 2.000000e+00 : f32
    %111 = vector.broadcast %cst_39 : f32 to vector<1x128xf32>
    %112 = arith.divf %110, %111 : vector<1x128xf32>
    %113 = vector.broadcast %103 : vector<1x128xf32> to vector<2x128xf32>
    %114 = arith.subf %97, %113 : vector<2x128xf32>
    %cst_40 = arith.constant 9.99999974E-6 : f32
    %115 = vector.broadcast %cst_40 : f32 to vector<1x128xf32>
    %116 = arith.addf %112, %115 : vector<1x128xf32>
    %117 = math.rsqrt %116 : vector<1x128xf32>
    %118 = vector.broadcast %117 : vector<1x128xf32> to vector<2x128xf32>
    %119 = arith.mulf %114, %118 : vector<2x128xf32>
    %120 = vector.broadcast %98 : vector<1x128xf32> to vector<2x128xf32>
    %121 = arith.mulf %119, %120 : vector<2x128xf32>
    %122 = vector.broadcast %99 : vector<1x128xf32> to vector<2x128xf32>
    %123 = arith.addf %121, %122 : vector<2x128xf32>
    %cst_41 = arith.constant 0.000000e+00 : f32
    %124 = vector.broadcast %cst_41 : f32 to vector<2x128xf32>
    %125 = arith.maximumf %123, %124 : vector<2x128xf32>
    %126 = arith.truncf %125 : vector<2x128xf32> to vector<2x128xbf16>
    %c0_42 = arith.constant 0 : index
    %c0_43 = arith.constant 0 : index
    %127 = vector.load %arg5[%c0_42, %c0_43] : memref<128x128xbf16, #tpu.memory_space<vmem>>, vector<128x128xbf16>
    %cst_44 = arith.constant dense<0.000000e+00> : vector<2x128xf32>
    %128 = tpu.matmul %126, %127, %cst_44 {dimension_numbers = #tpu.dot_dimension_numbers<[1], [0], [0], [1], [0, 0, 1, 1], [], []>} : vector<2x128xbf16>, vector<128x128xbf16>, vector<2x128xf32> -> vector<2x128xf32>
    %129 = vector.broadcast %2 : vector<1x128xf32> to vector<2x128xf32>
    %130 = arith.addf %128, %129 : vector<2x128xf32>
    %c0_45 = arith.constant 0 : index
    %c0_46 = arith.constant 0 : index
    %c0_47 = arith.constant 0 : index
    %131 = vector.load %arg9[%c0_45, %c0_46, %c0_47] : memref<2x2x128xf32, #tpu.memory_space<vmem>>, vector<1x2x128xf32>
    %132 = vector.shape_cast %131 : vector<1x2x128xf32> to vector<2x128xf32>
    %133 = vector.shape_cast %94 : vector<2x128xf32> to vector<1x2x128xf32>
    tpu.vector_store %arg9[%c0_45, %c0_46, %c0_47], %133 {strides = array<i32>} : memref<2x2x128xf32, #tpu.memory_space<vmem>>, vector<1x2x128xf32>,
    %c0_48 = arith.constant 0 : index
    %c0_49 = arith.constant 0 : index
    %c0_50 = arith.constant 0 : index
    %134 = vector.load %arg10[%c0_48, %c0_49, %c0_50] : memref<2x2x128xf32, #tpu.memory_space<vmem>>, vector<1x2x128xf32>
    %135 = vector.shape_cast %134 : vector<1x2x128xf32> to vector<2x128xf32>
    %136 = vector.shape_cast %130 : vector<2x128xf32> to vector<1x2x128xf32>
    tpu.vector_store %arg10[%c0_48, %c0_49, %c0_50], %136 {strides = array<i32>} : memref<2x2x128xf32, #tpu.memory_space<vmem>>, vector<1x2x128xf32>,
    %c1 = arith.constant 1 : index
    %c0_51 = arith.constant 0 : index
    %c0_52 = arith.constant 0 : index
    %137 = vector.load %arg0[%c1, %c0_51, %c0_52] : memref<2x2x512xbf16, #tpu.memory_space<vmem>>, vector<1x2x512xbf16>
    %138 = vector.shape_cast %137 : vector<1x2x512xbf16> to vector<2x512xbf16>
    %c0_53 = arith.constant 0 : index
    %c0_54 = arith.constant 0 : index
    %139 = vector.load %arg1[%c0_53, %c0_54] : memref<512x128xbf16, #tpu.memory_space<vmem>>, vector<512x128xbf16>
    %cst_55 = arith.constant dense<0.000000e+00> : vector<2x128xf32>
    %140 = tpu.matmul %138, %139, %cst_55 {dimension_numbers = #tpu.dot_dimension_numbers<[1], [0], [0], [1], [0, 0, 1, 1], [], []>} : vector<2x512xbf16>, vector<512x128xbf16>, vector<2x128xf32> -> vector<2x128xf32>
    %141 = vector.extract_strided_slice %0 {offsets = [0, 0], sizes = [1, 128], strides = [1, 1]} : vector<6x128xf32> to vector<1x128xf32>
    %142 = vector.extract_strided_slice %0 {offsets = [1, 0], sizes = [1, 128], strides = [1, 1]} : vector<6x128xf32> to vector<1x128xf32>
    %cst_56 = arith.constant dense<0.000000e+00> : vector<128xf32>
    %143 = vector.multi_reduction <add>, %140, %cst_56 [0] : vector<2x128xf32> to vector<128xf32>
    %144 = vector.shape_cast %143 : vector<128xf32> to vector<1x128xf32>
    %cst_57 = arith.constant 2.000000e+00 : f32
    %145 = vector.broadcast %cst_57 : f32 to vector<1x128xf32>
    %146 = arith.divf %144, %145 : vector<1x128xf32>
    %147 = vector.broadcast %146 : vector<1x128xf32> to vector<2x128xf32>
    %148 = arith.subf %140, %147 : vector<2x128xf32>
    %149 = vector.broadcast %146 : vector<1x128xf32> to vector<2x128xf32>
    %150 = arith.subf %140, %149 : vector<2x128xf32>
    %151 = arith.mulf %148, %150 : vector<2x128xf32>
    %cst_58 = arith.constant dense<0.000000e+00> : vector<128xf32>
    %152 = vector.multi_reduction <add>, %151, %cst_58 [0] : vector<2x128xf32> to vector<128xf32>
    %153 = vector.shape_cast %152 : vector<128xf32> to vector<1x128xf32>
    %cst_59 = arith.constant 2.000000e+00 : f32
    %154 = vector.broadcast %cst_59 : f32 to vector<1x128xf32>
    %155 = arith.divf %153, %154 : vector<1x128xf32>
    %156 = vector.broadcast %146 : vector<1x128xf32> to vector<2x128xf32>
    %157 = arith.subf %140, %156 : vector<2x128xf32>
    %cst_60 = arith.constant 9.99999974E-6 : f32
    %158 = vector.broadcast %cst_60 : f32 to vector<1x128xf32>
    %159 = arith.addf %155, %158 : vector<1x128xf32>
    %160 = math.rsqrt %159 : vector<1x128xf32>
    %161 = vector.broadcast %160 : vector<1x128xf32> to vector<2x128xf32>
    %162 = arith.mulf %157, %161 : vector<2x128xf32>
    %163 = vector.broadcast %141 : vector<1x128xf32> to vector<2x128xf32>
    %164 = arith.mulf %162, %163 : vector<2x128xf32>
    %165 = vector.broadcast %142 : vector<1x128xf32> to vector<2x128xf32>
    %166 = arith.addf %164, %165 : vector<2x128xf32>
    %cst_61 = arith.constant 0.000000e+00 : f32
    %167 = vector.broadcast %cst_61 : f32 to vector<2x128xf32>
    %168 = arith.maximumf %166, %167 : vector<2x128xf32>
    %169 = arith.truncf %168 : vector<2x128xf32> to vector<2x128xbf16>
    %c0_62 = arith.constant 0 : index
    %c0_63 = arith.constant 0 : index
    %170 = vector.load %arg2[%c0_62, %c0_63] : memref<128x128xbf16, #tpu.memory_space<vmem>>, vector<128x128xbf16>
    %cst_64 = arith.constant dense<0.000000e+00> : vector<2x128xf32>
    %171 = tpu.matmul %169, %170, %cst_64 {dimension_numbers = #tpu.dot_dimension_numbers<[1], [0], [0], [1], [0, 0, 1, 1], [], []>} : vector<2x128xbf16>, vector<128x128xbf16>, vector<2x128xf32> -> vector<2x128xf32>
    %172 = vector.extract_strided_slice %0 {offsets = [2, 0], sizes = [1, 128], strides = [1, 1]} : vector<6x128xf32> to vector<1x128xf32>
    %173 = vector.extract_strided_slice %0 {offsets = [3, 0], sizes = [1, 128], strides = [1, 1]} : vector<6x128xf32> to vector<1x128xf32>
    %cst_65 = arith.constant dense<0.000000e+00> : vector<128xf32>
    %174 = vector.multi_reduction <add>, %171, %cst_65 [0] : vector<2x128xf32> to vector<128xf32>
    %175 = vector.shape_cast %174 : vector<128xf32> to vector<1x128xf32>
    %cst_66 = arith.constant 2.000000e+00 : f32
    %176 = vector.broadcast %cst_66 : f32 to vector<1x128xf32>
    %177 = arith.divf %175, %176 : vector<1x128xf32>
    %178 = vector.broadcast %177 : vector<1x128xf32> to vector<2x128xf32>
    %179 = arith.subf %171, %178 : vector<2x128xf32>
    %180 = vector.broadcast %177 : vector<1x128xf32> to vector<2x128xf32>
    %181 = arith.subf %171, %180 : vector<2x128xf32>
    %182 = arith.mulf %179, %181 : vector<2x128xf32>
    %cst_67 = arith.constant dense<0.000000e+00> : vector<128xf32>
    %183 = vector.multi_reduction <add>, %182, %cst_67 [0] : vector<2x128xf32> to vector<128xf32>
    %184 = vector.shape_cast %183 : vector<128xf32> to vector<1x128xf32>
    %cst_68 = arith.constant 2.000000e+00 : f32
    %185 = vector.broadcast %cst_68 : f32 to vector<1x128xf32>
    %186 = arith.divf %184, %185 : vector<1x128xf32>
    %187 = vector.broadcast %177 : vector<1x128xf32> to vector<2x128xf32>
    %188 = arith.subf %171, %187 : vector<2x128xf32>
    %cst_69 = arith.constant 9.99999974E-6 : f32
    %189 = vector.broadcast %cst_69 : f32 to vector<1x128xf32>
    %190 = arith.addf %186, %189 : vector<1x128xf32>
    %191 = math.rsqrt %190 : vector<1x128xf32>
    %192 = vector.broadcast %191 : vector<1x128xf32> to vector<2x128xf32>
    %193 = arith.mulf %188, %192 : vector<2x128xf32>
    %194 = vector.broadcast %172 : vector<1x128xf32> to vector<2x128xf32>
    %195 = arith.mulf %193, %194 : vector<2x128xf32>
    %196 = vector.broadcast %173 : vector<1x128xf32> to vector<2x128xf32>
    %197 = arith.addf %195, %196 : vector<2x128xf32>
    %cst_70 = arith.constant 0.000000e+00 : f32
    %198 = vector.broadcast %cst_70 : f32 to vector<2x128xf32>
    %199 = arith.maximumf %197, %198 : vector<2x128xf32>
    %200 = arith.truncf %199 : vector<2x128xf32> to vector<2x128xbf16>
    %c0_71 = arith.constant 0 : index
    %c0_72 = arith.constant 0 : index
    %201 = vector.load %arg3[%c0_71, %c0_72] : memref<128x128xbf16, #tpu.memory_space<vmem>>, vector<128x128xbf16>
    %cst_73 = arith.constant dense<0.000000e+00> : vector<2x128xf32>
    %202 = tpu.matmul %200, %201, %cst_73 {dimension_numbers = #tpu.dot_dimension_numbers<[1], [0], [0], [1], [0, 0, 1, 1], [], []>} : vector<2x128xbf16>, vector<128x128xbf16>, vector<2x128xf32> -> vector<2x128xf32>
    %203 = vector.extract_strided_slice %0 {offsets = [4, 0], sizes = [1, 128], strides = [1, 1]} : vector<6x128xf32> to vector<1x128xf32>
    %204 = vector.extract_strided_slice %0 {offsets = [5, 0], sizes = [1, 128], strides = [1, 1]} : vector<6x128xf32> to vector<1x128xf32>
    %cst_74 = arith.constant dense<0.000000e+00> : vector<128xf32>
    %205 = vector.multi_reduction <add>, %202, %cst_74 [0] : vector<2x128xf32> to vector<128xf32>
    %206 = vector.shape_cast %205 : vector<128xf32> to vector<1x128xf32>
    %cst_75 = arith.constant 2.000000e+00 : f32
    %207 = vector.broadcast %cst_75 : f32 to vector<1x128xf32>
    %208 = arith.divf %206, %207 : vector<1x128xf32>
    %209 = vector.broadcast %208 : vector<1x128xf32> to vector<2x128xf32>
    %210 = arith.subf %202, %209 : vector<2x128xf32>
    %211 = vector.broadcast %208 : vector<1x128xf32> to vector<2x128xf32>
    %212 = arith.subf %202, %211 : vector<2x128xf32>
    %213 = arith.mulf %210, %212 : vector<2x128xf32>
    %cst_76 = arith.constant dense<0.000000e+00> : vector<128xf32>
    %214 = vector.multi_reduction <add>, %213, %cst_76 [0] : vector<2x128xf32> to vector<128xf32>
    %215 = vector.shape_cast %214 : vector<128xf32> to vector<1x128xf32>
    %cst_77 = arith.constant 2.000000e+00 : f32
    %216 = vector.broadcast %cst_77 : f32 to vector<1x128xf32>
    %217 = arith.divf %215, %216 : vector<1x128xf32>
    %218 = vector.broadcast %208 : vector<1x128xf32> to vector<2x128xf32>
    %219 = arith.subf %202, %218 : vector<2x128xf32>
    %cst_78 = arith.constant 9.99999974E-6 : f32
    %220 = vector.broadcast %cst_78 : f32 to vector<1x128xf32>
    %221 = arith.addf %217, %220 : vector<1x128xf32>
    %222 = math.rsqrt %221 : vector<1x128xf32>
    %223 = vector.broadcast %222 : vector<1x128xf32> to vector<2x128xf32>
    %224 = arith.mulf %219, %223 : vector<2x128xf32>
    %225 = vector.broadcast %203 : vector<1x128xf32> to vector<2x128xf32>
    %226 = arith.mulf %224, %225 : vector<2x128xf32>
    %227 = vector.broadcast %204 : vector<1x128xf32> to vector<2x128xf32>
    %228 = arith.addf %226, %227 : vector<2x128xf32>
    %229 = arith.truncf %228 : vector<2x128xf32> to vector<2x128xbf16>
    %c0_79 = arith.constant 0 : index
    %c0_80 = arith.constant 0 : index
    %230 = vector.load %arg4[%c0_79, %c0_80] : memref<128x128xbf16, #tpu.memory_space<vmem>>, vector<128x128xbf16>
    %cst_81 = arith.constant dense<0.000000e+00> : vector<2x128xf32>
    %231 = tpu.matmul %229, %230, %cst_81 {dimension_numbers = #tpu.dot_dimension_numbers<[1], [0], [0], [1], [0, 0, 1, 1], [], []>} : vector<2x128xbf16>, vector<128x128xbf16>, vector<2x128xf32> -> vector<2x128xf32>
    %232 = vector.extract_strided_slice %1 {offsets = [0, 0], sizes = [1, 128], strides = [1, 1]} : vector<2x128xf32> to vector<1x128xf32>
    %233 = vector.extract_strided_slice %1 {offsets = [1, 0], sizes = [1, 128], strides = [1, 1]} : vector<2x128xf32> to vector<1x128xf32>
    %cst_82 = arith.constant dense<0.000000e+00> : vector<128xf32>
    %234 = vector.multi_reduction <add>, %231, %cst_82 [0] : vector<2x128xf32> to vector<128xf32>
    %235 = vector.shape_cast %234 : vector<128xf32> to vector<1x128xf32>
    %cst_83 = arith.constant 2.000000e+00 : f32
    %236 = vector.broadcast %cst_83 : f32 to vector<1x128xf32>
    %237 = arith.divf %235, %236 : vector<1x128xf32>
    %238 = vector.broadcast %237 : vector<1x128xf32> to vector<2x128xf32>
    %239 = arith.subf %231, %238 : vector<2x128xf32>
    %240 = vector.broadcast %237 : vector<1x128xf32> to vector<2x128xf32>
    %241 = arith.subf %231, %240 : vector<2x128xf32>
    %242 = arith.mulf %239, %241 : vector<2x128xf32>
    %cst_84 = arith.constant dense<0.000000e+00> : vector<128xf32>
    %243 = vector.multi_reduction <add>, %242, %cst_84 [0] : vector<2x128xf32> to vector<128xf32>
    %244 = vector.shape_cast %243 : vector<128xf32> to vector<1x128xf32>
    %cst_85 = arith.constant 2.000000e+00 : f32
    %245 = vector.broadcast %cst_85 : f32 to vector<1x128xf32>
    %246 = arith.divf %244, %245 : vector<1x128xf32>
    %247 = vector.broadcast %237 : vector<1x128xf32> to vector<2x128xf32>
    %248 = arith.subf %231, %247 : vector<2x128xf32>
    %cst_86 = arith.constant 9.99999974E-6 : f32
    %249 = vector.broadcast %cst_86 : f32 to vector<1x128xf32>
    %250 = arith.addf %246, %249 : vector<1x128xf32>
    %251 = math.rsqrt %250 : vector<1x128xf32>
    %252 = vector.broadcast %251 : vector<1x128xf32> to vector<2x128xf32>
    %253 = arith.mulf %248, %252 : vector<2x128xf32>
    %254 = vector.broadcast %232 : vector<1x128xf32> to vector<2x128xf32>
    %255 = arith.mulf %253, %254 : vector<2x128xf32>
    %256 = vector.broadcast %233 : vector<1x128xf32> to vector<2x128xf32>
    %257 = arith.addf %255, %256 : vector<2x128xf32>
    %cst_87 = arith.constant 0.000000e+00 : f32
    %258 = vector.broadcast %cst_87 : f32 to vector<2x128xf32>
    %259 = arith.maximumf %257, %258 : vector<2x128xf32>
    %260 = arith.truncf %259 : vector<2x128xf32> to vector<2x128xbf16>
    %c0_88 = arith.constant 0 : index
    %c0_89 = arith.constant 0 : index
    %261 = vector.load %arg5[%c0_88, %c0_89] : memref<128x128xbf16, #tpu.memory_space<vmem>>, vector<128x128xbf16>
    %cst_90 = arith.constant dense<0.000000e+00> : vector<2x128xf32>
    %262 = tpu.matmul %260, %261, %cst_90 {dimension_numbers = #tpu.dot_dimension_numbers<[1], [0], [0], [1], [0, 0, 1, 1], [], []>} : vector<2x128xbf16>, vector<128x128xbf16>, vector<2x128xf32> -> vector<2x128xf32>
    %263 = vector.broadcast %2 : vector<1x128xf32> to vector<2x128xf32>
    %264 = arith.addf %262, %263 : vector<2x128xf32>
    %c1_91 = arith.constant 1 : index
    %c0_92 = arith.constant 0 : index
    %c0_93 = arith.constant 0 : index
    %265 = vector.load %arg9[%c1_91, %c0_92, %c0_93] : memref<2x2x128xf32, #tpu.memory_space<vmem>>, vector<1x2x128xf32>
    %266 = vector.shape_cast %265 : vector<1x2x128xf32> to vector<2x128xf32>
    %267 = vector.shape_cast %228 : vector<2x128xf32> to vector<1x2x128xf32>
    tpu.vector_store %arg9[%c1_91, %c0_92, %c0_93], %267 {strides = array<i32>} : memref<2x2x128xf32, #tpu.memory_space<vmem>>, vector<1x2x128xf32>,
    %c1_94 = arith.constant 1 : index
    %c0_95 = arith.constant 0 : index
    %c0_96 = arith.constant 0 : index
    %268 = vector.load %arg10[%c1_94, %c0_95, %c0_96] : memref<2x2x128xf32, #tpu.memory_space<vmem>>, vector<1x2x128xf32>
    %269 = vector.shape_cast %268 : vector<1x2x128xf32> to vector<2x128xf32>
    %270 = vector.shape_cast %264 : vector<2x128xf32> to vector<1x2x128xf32>
    tpu.vector_store %arg10[%c1_94, %c0_95, %c0_96], %270 {strides = array<i32>} : memref<2x2x128xf32, #tpu.memory_space<vmem>>, vector<1x2x128xf32>,
    return
  }
}

</mosaic_0001>

<llo_original>
// kernel: simsiam_forward.2
$region0: #{simsiam_forward.2}
  #allocation0 [shape = 'u32[]', space=smem, size = 0x4, offset = 0x4, fixed_abs, tag = 'smem constant byte address 0x4 - core index']
  #allocation1 [shape = 'u32[144,128]{1,0:T(1,128)}', space=vmem, size = 0x12000, scoped, tag = 'internal scratch']
  %s0 = inlined_call_operand.vmem [shape: f32[256,36], index: 0, kind: input, shape index: {}]
  %s1 = inlined_call_operand.vmem [shape: bf16[36,128], index: 1, kind: input, shape index: {}]
  %s2 = inlined_call_operand.vmem [shape: f32[1,128], index: 2, kind: input, shape index: {}]
  %s3 = inlined_call_operand.vmem [shape: bf16[256,128], index: 3, kind: output, shape index: {}]
  %s4 = sld [smem:[#allocation0]]
  $region22: #{simsiam_forward.2} parent=0
    _
  %s6 = ssub.s32 1, %s4
  %s7 = scalar_select 0, %s6, %s4
  // Predicated region
  $region2: #{simsiam_forward.2} parent=0 // pred_check
    _
  $region3: #{simsiam_forward.2} parent=0 // pred_check_branch
    %9 = sbr.rel (0) target = $region5
  $region4: #{simsiam_forward.2} parent=0 // pred_region
    _
  $region5: #{simsiam_forward.2} parent=0 // pred_fallthru
    _
  // Predicated region
  $region6: #{simsiam_forward.2} parent=0 // pred_check
    _
  $region7: #{simsiam_forward.2} parent=0 // pred_check_branch
    %11 = sbr.rel (0) target = $region9
  $region8: #{simsiam_forward.2} parent=0 // pred_region
    _
  $region9: #{simsiam_forward.2} parent=0 // pred_fallthru
    _
  // Predicated region
  $region10: #{simsiam_forward.2} parent=0 // pred_check
    _
  $region11: #{simsiam_forward.2} parent=0 // pred_check_branch
    %13 = sbr.rel (0) target = $region13
  $region12: #{simsiam_forward.2} parent=0 // pred_region
    _
  $region13: #{simsiam_forward.2} parent=0 // pred_fallthru
    _
  %v15 = vld [vmem:[%s0] sm:$0xff]
  %v16 = vld [vmem:[%s0 + $0x8] sm:$0xff]
  %v17 = vld [vmem:[%s0 + $0x10] sm:$0xff]
  %v18 = vld [vmem:[%s0 + $0x18] sm:$0xff]
  %v19 = vld [vmem:[%s0 + $0x20] sm:$0xff]
  %v20 = vld [vmem:[%s0 + $0x28] sm:$0xff]
  %v21 = vld [vmem:[%s0 + $0x30] sm:$0xff]
  %v22 = vld [vmem:[%s0 + $0x38] sm:$0xff]
  %v23 = vld [vmem:[%s0 + $0x40] sm:$0xff]
  %v24 = vld [vmem:[%s0 + $0x48] sm:$0xff]
  %v25 = vld [vmem:[%s0 + $0x50] sm:$0xff]
  %v26 = vld [vmem:[%s0 + $0x58] sm:$0xff]
  %v27 = vld [vmem:[%s0 + $0x60] sm:$0xff]
  %v28 = vld [vmem:[%s0 + $0x68] sm:$0xff]
  %v29 = vld [vmem:[%s0 + $0x70] sm:$0xff]
  %v30 = vld [vmem:[%s0 + $0x78] sm:$0xff]
  %v31 = vld [vmem:[%s0 + $0x80] sm:$0xff]
  %v32 = vld [vmem:[%s0 + $0x88] sm:$0xff]
  %v33 = vld [vmem:[%s0 + $0x90] sm:$0xff]
  %v34 = vld [vmem:[%s0 + $0x98] sm:$0xff]
  %v35 = vld [vmem:[%s0 + $0xa0] sm:$0xff]
  %v36 = vld [vmem:[%s0 + $0xa8] sm:$0xff]
  %v37 = vld [vmem:[%s0 + $0xb0] sm:$0xff]
  %v38 = vld [vmem:[%s0 + $0xb8] sm:$0xff]
  %v39 = vld [vmem:[%s0 + $0xc0] sm:$0xff]
  %v40 = vld [vmem:[%s0 + $0xc8] sm:$0xff]
  %v41 = vld [vmem:[%s0 + $0xd0] sm:$0xff]
  %v42 = vld [vmem:[%s0 + $0xd8] sm:$0xff]
  %v43 = vld [vmem:[%s0 + $0xe0] sm:$0xff]
  %v44 = vld [vmem:[%s0 + $0xe8] sm:$0xff]
  %v45 = vld [vmem:[%s0 + $0xf0] sm:$0xff]
  %v46 = vld [vmem:[%s0 + $0xf8] sm:$0xff]
  %v47 = vpack.c.bf16 %v16, %v15
  %v48 = vpack.c.bf16 %v18, %v17
  %v49 = vpack.c.bf16 %v20, %v19
  %v50 = vpack.c.bf16 %v22, %v21
  %v51 = vpack.c.bf16 %v24, %v23
  %v52 = vpack.c.bf16 %v26, %v25
  %v53 = vpack.c.bf16 %v28, %v27
  %v54 = vpack.c.bf16 %v30, %v29
  %v55 = vpack.c.bf16 %v32, %v31
  %v56 = vpack.c.bf16 %v34, %v33
  %v57 = vpack.c.bf16 %v36, %v35
  %v58 = vpack.c.bf16 %v38, %v37
  %v59 = vpack.c.bf16 %v40, %v39
  %v60 = vpack.c.bf16 %v42, %v41
  %v61 = vpack.c.bf16 %v44, %v43
  %v62 = vpack.c.bf16 %v46, %v45
  %v63 = vld [vmem:[%s1] sm:$0xf]
  %v64 = vld [vmem:[%s1 + $0x4] sm:$0xf]
  %v65 = vld [vmem:[%s1 + $0x8] sm:$0xf]
  %v66 = vld [vmem:[%s1 + $0xc] sm:$0xf]
  %v67 = vld [vmem:[%s1 + $0x10] sm:$0x3]
  %v68 = vld [vmem:[%s2] sm:$0x1]
  %v70 = vlaneseq
  %v71 = vshrl.u32 %v70, 7
  %v72 = vsub.s32 0, %v71
  %v73 = vrot.slane %v68, %v72
  %v80 = vunpack.c.l.b16 %v63
  %v81 = vunpack.c.l.b16 %v64
  %v82 = vunpack.c.l.b16 %v65
  %v83 = vunpack.c.l.b16 %v66
  %v84 = vunpack.c.l.b16 %v67
  %v85 = vpack.c.b16 %v81, %v80
  %v86 = vpack.c.b16 %v83, %v82
  %v87 = vpack.c.b16 %v84, %v84
  %vm90 = vcmask 293888
  %v92 = vsel %vm90, %v47, 0
  %v95 = vsel %vm90, %v48, 0
  %v98 = vsel %vm90, %v49, 0
  %v101 = vsel %vm90, %v50, 0
  %v104 = vsel %vm90, %v51, 0
  %v107 = vsel %vm90, %v52, 0
  %v110 = vsel %vm90, %v53, 0
  %v113 = vsel %vm90, %v54, 0
  %v116 = vsel %vm90, %v55, 0
  %v119 = vsel %vm90, %v56, 0
  %v122 = vsel %vm90, %v57, 0
  %v125 = vsel %vm90, %v58, 0
  %v128 = vsel %vm90, %v59, 0
  %v131 = vsel %vm90, %v60, 0
  %v134 = vsel %vm90, %v61, 0
  %v137 = vsel %vm90, %v62, 0
  %vm139 = vcmask 1041408
  %v141 = vsel %vm139, %v87, 0
  %143 = vmatprep.subr.bf16.mxu0 0
  %144 = vmatpush1.bf16.msra.mxu0 %v85
  %145 = vmatprep.subr.bf16.mxu0 0
  %146 = vmatpush1.bf16.msra.mxu0 %v86
  %147 = vmatprep.subr.bf16.mxu0 0
  %148 = vmatpush1.bf16.msra.mxu0 %v141
  %149 = vmatprep.subr.bf16.mxu0 0
  %150 = vmatpush1.bf16.msra.mxu0 0
  %151 = vmatprep.subr.bf16.mxu0 0
  %152 = vmatpush1.bf16.msra.mxu0 0
  %153 = vmatprep.subr.bf16.mxu0 0
  %154 = vmatpush1.bf16.msra.mxu0 0
  %155 = vmatprep.subr.bf16.mxu0 0
  %156 = vmatpush1.bf16.msra.mxu0 0
  %157 = vmatprep.subr.bf16.mxu0 0
  %158 = vmatpush1.bf16.msra.mxu0 0
  %159 = vmatprep.subr.bf16.mxu0 0
  %160 = vmatpush1.bf16.msra.mxu0 0
  %161 = vmatprep.subr.bf16.mxu0 0
  %162 = vmatpush1.bf16.msra.mxu0 0
  %163 = vmatprep.subr.bf16.mxu0 0
  %164 = vmatpush1.bf16.msra.mxu0 0
  %165 = vmatprep.subr.bf16.mxu0 0
  %166 = vmatpush1.bf16.msra.mxu0 0
  %167 = vmatprep.subr.bf16.mxu0 0
  %168 = vmatpush1.bf16.msra.mxu0 0
  %169 = vmatprep.subr.bf16.mxu0 0
  %170 = vmatpush1.bf16.msra.mxu0 0
  %171 = vmatprep.subr.bf16.mxu0 0
  %172 = vmatpush1.bf16.msra.mxu0 0
  %173 = vmatprep.subr.bf16.mxu0 0
  %174 = vmatpush1.bf16.msra.mxu0 0
  %175 = vmatprep.mubr.bf16.mxu0 0
  %176 = vmatmul.mubr.bf16.gmra.mrb[0].mxu0 %v92
  %v177 = vpop.f32.mrb[0].mxu0
  %v178 = vadd.f32 %v73, %v177
  %v179 = vpop.f32.mrb[0].mxu0
  %v180 = vpop.f32.mrb[0].mxu0
  %v181 = vadd.f32 %v73, %v180
  %v182 = vpop.f32.mrb[0].mxu0
  %183 = vmatprep.mubr.bf16.mxu0 0
  %184 = vmatmul.mubr.bf16.gmra.mrb[0].mxu0 %v95
  %v185 = vpop.f32.mrb[0].mxu0
  %v186 = vadd.f32 %v73, %v185
  %v187 = vpop.f32.mrb[0].mxu0
  %v188 = vpop.f32.mrb[0].mxu0
  %v189 = vadd.f32 %v73, %v188
  %v190 = vpop.f32.mrb[0].mxu0
  %191 = vmatprep.mubr.bf16.mxu0 0
  %192 = vmatmul.mubr.bf16.gmra.mrb[0].mxu0 %v98
  %v193 = vpop.f32.mrb[0].mxu0
  %v194 = vadd.f32 %v73, %v193
  %v195 = vpop.f32.mrb[0].mxu0
  %v196 = vpop.f32.mrb[0].mxu0
  %v197 = vadd.f32 %v73, %v196
  %v198 = vpop.f32.mrb[0].mxu0
  %199 = vmatprep.mubr.bf16.mxu0 0
  %200 = vmatmul.mubr.bf16.gmra.mrb[0].mxu0 %v101
  %v201 = vpop.f32.mrb[0].mxu0
  %v202 = vadd.f32 %v73, %v201
  %v203 = vpop.f32.mrb[0].mxu0
  %v204 = vpop.f32.mrb[0].mxu0
  %v205 = vadd.f32 %v73, %v204
  %v206 = vpop.f32.mrb[0].mxu0
  %207 = vmatprep.mubr.bf16.mxu0 0
  %208 = vmatmul.mubr.bf16.gmra.mrb[0].mxu0 %v104
  %v209 = vpop.f32.mrb[0].mxu0
  %v210 = vadd.f32 %v73, %v209
  %v211 = vpop.f32.mrb[0].mxu0
  %v212 = vpop.f32.mrb[0].mxu0
  %v213 = vadd.f32 %v73, %v212
  %v214 = vpop.f32.mrb[0].mxu0
  %215 = vmatprep.mubr.bf16.mxu0 0
  %216 = vmatmul.mubr.bf16.gmra.mrb[0].mxu0 %v107
  %v217 = vpop.f32.mrb[0].mxu0
  %v218 = vadd.f32 %v73, %v217
  %v219 = vpop.f32.mrb[0].mxu0
  %v220 = vpop.f32.mrb[0].mxu0
  %v221 = vadd.f32 %v73, %v220
  %v222 = vpop.f32.mrb[0].mxu0
  %223 = vmatprep.mubr.bf16.mxu0 0
  %224 = vmatmul.mubr.bf16.gmra.mrb[0].mxu0 %v110
  %v225 = vpop.f32.mrb[0].mxu0
  %v226 = vadd.f32 %v73, %v225
  %v227 = vpop.f32.mrb[0].mxu0
  %v228 = vpop.f32.mrb[0].mxu0
  %v229 = vadd.f32 %v73, %v228
  %v230 = vpop.f32.mrb[0].mxu0
  %231 = vmatprep.mubr.bf16.mxu0 0
  %232 = vmatmul.mubr.bf16.gmra.mrb[0].mxu0 %v113
  %v233 = vpop.f32.mrb[0].mxu0
  %v234 = vadd.f32 %v73, %v233
  %v235 = vpop.f32.mrb[0].mxu0
  %v236 = vpop.f32.mrb[0].mxu0
  %v237 = vadd.f32 %v73, %v236
  %v238 = vpop.f32.mrb[0].mxu0
  %239 = vmatprep.mubr.bf16.mxu0 0
  %240 = vmatmul.mubr.bf16.gmra.mrb[0].mxu0 %v116
  %v241 = vpop.f32.mrb[0].mxu0
  %v242 = vadd.f32 %v73, %v241
  %v243 = vpop.f32.mrb[0].mxu0
  %v244 = vpop.f32.mrb[0].mxu0
  %v245 = vadd.f32 %v73, %v244
  %v246 = vpop.f32.mrb[0].mxu0
  %247 = vmatprep.mubr.bf16.mxu0 0
  %248 = vmatmul.mubr.bf16.gmra.mrb[0].mxu0 %v119
  %v249 = vpop.f32.mrb[0].mxu0
  %v250 = vadd.f32 %v73, %v249
  %v251 = vpop.f32.mrb[0].mxu0
  %v252 = vpop.f32.mrb[0].mxu0
  %v253 = vadd.f32 %v73, %v252
  %v254 = vpop.f32.mrb[0].mxu0
  %255 = vmatprep.mubr.bf16.mxu0 0
  %256 = vmatmul.mubr.bf16.gmra.mrb[0].mxu0 %v122
  %v257 = vpop.f32.mrb[0].mxu0
  %v258 = vadd.f32 %v73, %v257
  %v259 = vpop.f32.mrb[0].mxu0
  %v260 = vpop.f32.mrb[0].mxu0
  %v261 = vadd.f32 %v73, %v260
  %v262 = vpop.f32.mrb[0].mxu0
  %263 = vmatprep.mubr.bf16.mxu0 0
  %264 = vmatmul.mubr.bf16.gmra.mrb[0].mxu0 %v125
  %v265 = vpop.f32.mrb[0].mxu0
  %v266 = vadd.f32 %v73, %v265
  %v267 = vpop.f32.mrb[0].mxu0
  %v268 = vpop.f32.mrb[0].mxu0
  %v269 = vadd.f32 %v73, %v268
  %v270 = vpop.f32.mrb[0].mxu0
  %271 = vmatprep.mubr.bf16.mxu0 0
  %272 = vmatmul.mubr.bf16.gmra.mrb[0].mxu0 %v128
  %v273 = vpop.f32.mrb[0].mxu0
  %v274 = vadd.f32 %v73, %v273
  %v275 = vpop.f32.mrb[0].mxu0
  %v276 = vpop.f32.mrb[0].mxu0
  %v277 = vadd.f32 %v73, %v276
  %v278 = vpop.f32.mrb[0].mxu0
  %279 = vmatprep.mubr.bf16.mxu0 0
  %280 = vmatmul.mubr.bf16.gmra.mrb[0].mxu0 %v131
  %v281 = vpop.f32.mrb[0].mxu0
  %v282 = vadd.f32 %v73, %v281
  %v283 = vpop.f32.mrb[0].mxu0
  %v284 = vpop.f32.mrb[0].mxu0
  %v285 = vadd.f32 %v73, %v284
  %v286 = vpop.f32.mrb[0].mxu0
  %287 = vmatprep.mubr.bf16.mxu0 0
  %288 = vmatmul.mubr.bf16.gmra.mrb[0].mxu0 %v134
  %v289 = vpop.f32.mrb[0].mxu0
  %v290 = vadd.f32 %v73, %v289
  %v291 = vpop.f32.mrb[0].mxu0
  %v292 = vpop.f32.mrb[0].mxu0
  %v293 = vadd.f32 %v73, %v292
  %v294 = vpop.f32.mrb[0].mxu0
  %295 = vmatprep.mubr.bf16.mxu0 0
  %296 = vmatmul.mubr.bf16.gmra.mrb[0].mxu0 %v137
  %v297 = vpop.f32.mrb[0].mxu0
  %v298 = vadd.f32 %v73, %v297
  %v299 = vpop.f32.mrb[0].mxu0
  %v300 = vpop.f32.mrb[0].mxu0
  %v301 = vadd.f32 %v73, %v300
  %v302 = vpop.f32.mrb[0].mxu0
  %303 = vdwg.mxu0
  %v304 = vmax.f32 %v178, 0.0
  %v305 = vmax.f32 %v181, 0.0
  %v306 = vmax.f32 %v186, 0.0
  %v307 = vmax.f32 %v189, 0.0
  %v308 = vmax.f32 %v194, 0.0
  %v309 = vmax.f32 %v197, 0.0
  %v310 = vmax.f32 %v202, 0.0
  %v311 = vmax.f32 %v205, 0.0
  %v312 = vmax.f32 %v210, 0.0
  %v313 = vmax.f32 %v213, 0.0
  %v314 = vmax.f32 %v218, 0.0
  %v315 = vmax.f32 %v221, 0.0
  %v316 = vmax.f32 %v226, 0.0
  %v317 = vmax.f32 %v229, 0.0
  %v318 = vmax.f32 %v234, 0.0
  %v319 = vmax.f32 %v237, 0.0
  %v320 = vmax.f32 %v242, 0.0
  %v321 = vmax.f32 %v245, 0.0
  %v322 = vmax.f32 %v250, 0.0
  %v323 = vmax.f32 %v253, 0.0
  %v324 = vmax.f32 %v258, 0.0
  %v325 = vmax.f32 %v261, 0.0
  %v326 = vmax.f32 %v266, 0.0
  %v327 = vmax.f32 %v269, 0.0
  %v328 = vmax.f32 %v274, 0.0
  %v329 = vmax.f32 %v277, 0.0
  %v330 = vmax.f32 %v282, 0.0
  %v331 = vmax.f32 %v285, 0.0
  %v332 = vmax.f32 %v290, 0.0
  %v333 = vmax.f32 %v293, 0.0
  %v334 = vmax.f32 %v298, 0.0
  %v335 = vmax.f32 %v301, 0.0
  %v336 = vpack.c.bf16 %v305, %v304
  %v337 = vpack.c.bf16 %v307, %v306
  %v338 = vpack.c.bf16 %v309, %v308
  %v339 = vpack.c.bf16 %v311, %v310
  %v340 = vpack.c.bf16 %v313, %v312
  %v341 = vpack.c.bf16 %v315, %v314
  %v342 = vpack.c.bf16 %v317, %v316
  %v343 = vpack.c.bf16 %v319, %v318
  %v344 = vpack.c.bf16 %v321, %v320
  %v345 = vpack.c.bf16 %v323, %v322
  %v346 = vpack.c.bf16 %v325, %v324
  %v347 = vpack.c.bf16 %v327, %v326
  %v348 = vpack.c.bf16 %v329, %v328
  %v349 = vpack.c.bf16 %v331, %v330
  %v350 = vpack.c.bf16 %v333, %v332
  %v351 = vpack.c.bf16 %v335, %v334
  %v368 = vunpack.c.l.b16 %v336
  %v369 = vunpack.c.h.b16 %v336
  %v370 = vunpack.c.l.b16 %v337
  %v371 = vunpack.c.h.b16 %v337
  %v372 = vunpack.c.l.b16 %v338
  %v373 = vunpack.c.h.b16 %v338
  %v374 = vunpack.c.l.b16 %v339
  %v375 = vunpack.c.h.b16 %v339
  %v376 = vunpack.c.l.b16 %v340
  %v377 = vunpack.c.h.b16 %v340
  %v378 = vunpack.c.l.b16 %v341
  %v379 = vunpack.c.h.b16 %v341
  %v380 = vunpack.c.l.b16 %v342
  %v381 = vunpack.c.h.b16 %v342
  %v382 = vunpack.c.l.b16 %v343
  %v383 = vunpack.c.h.b16 %v343
  %v384 = vunpack.c.l.b16 %v344
  %v385 = vunpack.c.h.b16 %v344
  %v386 = vunpack.c.l.b16 %v345
  %v387 = vunpack.c.h.b16 %v345
  %v388 = vunpack.c.l.b16 %v346
  %v389 = vunpack.c.h.b16 %v346
  %v390 = vunpack.c.l.b16 %v347
  %v391 = vunpack.c.h.b16 %v347
  %v392 = vunpack.c.l.b16 %v348
  %v393 = vunpack.c.h.b16 %v348
  %v394 = vunpack.c.l.b16 %v349
  %v395 = vunpack.c.h.b16 %v349
  %v396 = vunpack.c.l.b16 %v350
  %v397 = vunpack.c.h.b16 %v350
  %v398 = vunpack.c.l.b16 %v351
  %v399 = vunpack.c.h.b16 %v351
  %v400 = vpack.c.b16 %v368, %v368
  %v401 = vpack.c.b16 %v369, %v369
  %v402 = vpack.c.b16 %v370, %v370
  %v403 = vpack.c.b16 %v371, %v371
  %v404 = vpack.c.b16 %v372, %v372
  %v405 = vpack.c.b16 %v373, %v373
  %v406 = vpack.c.b16 %v374, %v374
  %v407 = vpack.c.b16 %v375, %v375
  %v408 = vpack.c.b16 %v376, %v376
  %v409 = vpack.c.b16 %v377, %v377
  %v410 = vpack.c.b16 %v378, %v378
  %v411 = vpack.c.b16 %v379, %v379
  %v412 = vpack.c.b16 %v380, %v380
  %v413 = vpack.c.b16 %v381, %v381
  %v414 = vpack.c.b16 %v382, %v382
  %v415 = vpack.c.b16 %v383, %v383
  %v416 = vpack.c.b16 %v384, %v384
  %v417 = vpack.c.b16 %v385, %v385
  %v418 = vpack.c.b16 %v386, %v386
  %v419 = vpack.c.b16 %v387, %v387
  %v420 = vpack.c.b16 %v388, %v388
  %v421 = vpack.c.b16 %v389, %v389
  %v422 = vpack.c.b16 %v390, %v390
  %v423 = vpack.c.b16 %v391, %v391
  %v424 = vpack.c.b16 %v392, %v392
  %v425 = vpack.c.b16 %v393, %v393
  %v426 = vpack.c.b16 %v394, %v394
  %v427 = vpack.c.b16 %v395, %v395
  %v428 = vpack.c.b16 %v396, %v396
  %v429 = vpack.c.b16 %v397, %v397
  %v430 = vpack.c.b16 %v398, %v398
  %v431 = vpack.c.b16 %v399, %v399
  %464 = vst [vmem:[%s3] sm:$0xf] %v400
  %465 = vst [vmem:[%s3 + $0x4] sm:$0xf] %v401
  %466 = vst [vmem:[%s3 + $0x8] sm:$0xf] %v402
  %467 = vst [vmem:[%s3 + $0xc] sm:$0xf] %v403
  %468 = vst [vmem:[%s3 + $0x10] sm:$0xf] %v404
  %469 = vst [vmem:[%s3 + $0x14] sm:$0xf] %v405
  %470 = vst [vmem:[%s3 + $0x18] sm:$0xf] %v406
  %471 = vst [vmem:[%s3 + $0x1c] sm:$0xf] %v407
  %472 = vst [vmem:[%s3 + $0x20] sm:$0xf] %v408
  %473 = vst [vmem:[%s3 + $0x24] sm:$0xf] %v409
  %474 = vst [vmem:[%s3 + $0x28] sm:$0xf] %v410
  %475 = vst [vmem:[%s3 + $0x2c] sm:$0xf] %v411
  %476 = vst [vmem:[%s3 + $0x30] sm:$0xf] %v412
  %477 = vst [vmem:[%s3 + $0x34] sm:$0xf] %v413
  %478 = vst [vmem:[%s3 + $0x38] sm:$0xf] %v414
  %479 = vst [vmem:[%s3 + $0x3c] sm:$0xf] %v415
  %480 = vst [vmem:[%s3 + $0x40] sm:$0xf] %v416
  %481 = vst [vmem:[%s3 + $0x44] sm:$0xf] %v417
  %482 = vst [vmem:[%s3 + $0x48] sm:$0xf] %v418
  %483 = vst [vmem:[%s3 + $0x4c] sm:$0xf] %v419
  %484 = vst [vmem:[%s3 + $0x50] sm:$0xf] %v420
  %485 = vst [vmem:[%s3 + $0x54] sm:$0xf] %v421
  %486 = vst [vmem:[%s3 + $0x58] sm:$0xf] %v422
  %487 = vst [vmem:[%s3 + $0x5c] sm:$0xf] %v423
  %488 = vst [vmem:[%s3 + $0x60] sm:$0xf] %v424
  %489 = vst [vmem:[%s3 + $0x64] sm:$0xf] %v425
  %490 = vst [vmem:[%s3 + $0x68] sm:$0xf] %v426
  %491 = vst [vmem:[%s3 + $0x6c] sm:$0xf] %v427
  %492 = vst [vmem:[%s3 + $0x70] sm:$0xf] %v428
  %493 = vst [vmem:[%s3 + $0x74] sm:$0xf] %v429
  %494 = vst [vmem:[%s3 + $0x78] sm:$0xf] %v430
  %495 = vst [vmem:[%s3 + $0x7c] sm:$0xf] %v431
  // Predicated region
  $region14: #{simsiam_forward.2} parent=0 // pred_check
    _
  $region15: #{simsiam_forward.2} parent=0 // pred_check_branch
    %497 = sbr.rel (0) target = $region17
  $region16: #{simsiam_forward.2} parent=0 // pred_region
    _
  $region17: #{simsiam_forward.2} parent=0 // pred_fallthru
    _
  // Predicated region
  $region18: #{simsiam_forward.2} parent=0 // pred_check
    _
  $region19: #{simsiam_forward.2} parent=0 // pred_check_branch
    %499 = sbr.rel (0) target = $region21
  $region20: #{simsiam_forward.2} parent=0 // pred_region
    _
  $region21: #{simsiam_forward.2} parent=0 // pred_fallthru
    _

// kernel: simsiam_forward.3
$region0: #{simsiam_forward.3}
  #allocation0 [shape = 'u32[]', space=smem, size = 0x4, offset = 0x4, fixed_abs, tag = 'smem constant byte address 0x4 - core index']
  #allocation1 [shape = 'u32[144,128]{1,0:T(1,128)}', space=vmem, size = 0x12000, scoped, tag = 'internal scratch']
  %s0 = inlined_call_operand.vmem [shape: bf16[2,2,512], index: 0, kind: input, shape index: {}]
  %s1 = inlined_call_operand.vmem [shape: bf16[512,128], index: 1, kind: input, shape index: {}]
  %s2 = inlined_call_operand.vmem [shape: bf16[128,128], index: 2, kind: input, shape index: {}]
  %s3 = inlined_call_operand.vmem [shape: bf16[128,128], index: 3, kind: input, shape index: {}]
  %s4 = inlined_call_operand.vmem [shape: bf16[128,128], index: 4, kind: input, shape index: {}]
  %s5 = inlined_call_operand.vmem [shape: bf16[128,128], index: 5, kind: input, shape index: {}]
  %s6 = inlined_call_operand.vmem [shape: f32[6,128], index: 6, kind: input, shape index: {}]
  %s7 = inlined_call_operand.vmem [shape: f32[2,128], index: 7, kind: input, shape index: {}]
  %s8 = inlined_call_operand.vmem [shape: f32[1,128], index: 8, kind: input, shape index: {}]
  %s9 = inlined_call_operand.vmem [shape: f32[2,2,128], index: 9, kind: output, shape index: {0}]
  %s10 = inlined_call_operand.vmem [shape: f32[2,2,128], index: 10, kind: output, shape index: {1}]
  %11 = xla_tuple %s9, %s10
  %s12 = sld [smem:[#allocation0]]
  $region54: #{simsiam_forward.3} parent=0
    _
  %s14 = ssub.s32 1, %s12
  %s15 = scalar_select 0, %s14, %s12
  // Predicated region
  $region2: #{simsiam_forward.3} parent=0 // pred_check
    _
  $region3: #{simsiam_forward.3} parent=0 // pred_check_branch
    %17 = sbr.rel (0) target = $region5
  $region4: #{simsiam_forward.3} parent=0 // pred_region
    _
  $region5: #{simsiam_forward.3} parent=0 // pred_fallthru
    _
  // Predicated region
  $region6: #{simsiam_forward.3} parent=0 // pred_check
    _
  $region7: #{simsiam_forward.3} parent=0 // pred_check_branch
    %19 = sbr.rel (0) target = $region9
  $region8: #{simsiam_forward.3} parent=0 // pred_region
    _
  $region9: #{simsiam_forward.3} parent=0 // pred_fallthru
    _
  // Predicated region
  $region10: #{simsiam_forward.3} parent=0 // pred_check
    _
  $region11: #{simsiam_forward.3} parent=0 // pred_check_branch
    %21 = sbr.rel (0) target = $region13
  $region12: #{simsiam_forward.3} parent=0 // pred_region
    _
  $region13: #{simsiam_forward.3} parent=0 // pred_fallthru
    _
  // Predicated region
  $region14: #{simsiam_forward.3} parent=0 // pred_check
    _
  $region15: #{simsiam_forward.3} parent=0 // pred_check_branch
    %23 = sbr.rel (0) target = $region17
  $region16: #{simsiam_forward.3} parent=0 // pred_region
    _
  $region17: #{simsiam_forward.3} parent=0 // pred_fallthru
    _
  // Predicated region
  $region18: #{simsiam_forward.3} parent=0 // pred_check
    _
  $region19: #{simsiam_forward.3} parent=0 // pred_check_branch
    %25 = sbr.rel (0) target = $region21
  $region20: #{simsiam_forward.3} parent=0 // pred_region
    _
  $region21: #{simsiam_forward.3} parent=0 // pred_fallthru
    _
  // Predicated region
  $region22: #{simsiam_forward.3} parent=0 // pred_check
    _
  $region23: #{simsiam_forward.3} parent=0 // pred_check_branch
    %27 = sbr.rel (0) target = $region25
  $region24: #{simsiam_forward.3} parent=0 // pred_region
    _
  $region25: #{simsiam_forward.3} parent=0 // pred_fallthru
    _
  // Predicated region
  $region26: #{simsiam_forward.3} parent=0 // pred_check
    _
  $region27: #{simsiam_forward.3} parent=0 // pred_check_branch
    %29 = sbr.rel (0) target = $region29
  $region28: #{simsiam_forward.3} parent=0 // pred_region
    _
  $region29: #{simsiam_forward.3} parent=0 // pred_fallthru
    _
  // Predicated region
  $region30: #{simsiam_forward.3} parent=0 // pred_check
    _
  $region31: #{simsiam_forward.3} parent=0 // pred_check_branch
    %31 = sbr.rel (0) target = $region33
  $region32: #{simsiam_forward.3} parent=0 // pred_region
    _
  $region33: #{simsiam_forward.3} parent=0 // pred_fallthru
    _
  // Predicated region
  $region34: #{simsiam_forward.3} parent=0 // pred_check
    _
  $region35: #{simsiam_forward.3} parent=0 // pred_check_branch
    %33 = sbr.rel (0) target = $region37
  $region36: #{simsiam_forward.3} parent=0 // pred_region
    _
  $region37: #{simsiam_forward.3} parent=0 // pred_fallthru
    _
  %v35 = vld [vmem:[%s6] sm:$0x3f]
  %v36 = vld [vmem:[%s7] sm:$0x3]
  %v37 = vld [vmem:[%s8] sm:$0x1]
  %v38 = vld [vmem:[%s0] sm:$0xf]
  %v39 = vld [vmem:[%s1] sm:$0xf]
  %v40 = vld [vmem:[%s1 + $0x4] sm:$0xf]
  %v41 = vld [vmem:[%s1 + $0x8] sm:$0xf]
  %v42 = vld [vmem:[%s1 + $0xc] sm:$0xf]
  %v43 = vld [vmem:[%s1 + $0x10] sm:$0xf]
  %v44 = vld [vmem:[%s1 + $0x14] sm:$0xf]
  %v45 = vld [vmem:[%s1 + $0x18] sm:$0xf]
  %v46 = vld [vmem:[%s1 + $0x1c] sm:$0xf]
  %v47 = vld [vmem:[%s1 + $0x20] sm:$0xf]
  %v48 = vld [vmem:[%s1 + $0x24] sm:$0xf]
  %v49 = vld [vmem:[%s1 + $0x28] sm:$0xf]
  %v50 = vld [vmem:[%s1 + $0x2c] sm:$0xf]
  %v51 = vld [vmem:[%s1 + $0x30] sm:$0xf]
  %v52 = vld [vmem:[%s1 + $0x34] sm:$0xf]
  %v53 = vld [vmem:[%s1 + $0x38] sm:$0xf]
  %v54 = vld [vmem:[%s1 + $0x3c] sm:$0xf]
  %v55 = vld [vmem:[%s1 + $0x40] sm:$0xf]
  %v56 = vld [vmem:[%s1 + $0x44] sm:$0xf]
  %v57 = vld [vmem:[%s1 + $0x48] sm:$0xf]
  %v58 = vld [vmem:[%s1 + $0x4c] sm:$0xf]
  %v59 = vld [vmem:[%s1 + $0x50] sm:$0xf]
  %v60 = vld [vmem:[%s1 + $0x54] sm:$0xf]
  %v61 = vld [vmem:[%s1 + $0x58] sm:$0xf]
  %v62 = vld [vmem:[%s1 + $0x5c] sm:$0xf]
  %v63 = vld [vmem:[%s1 + $0x60] sm:$0xf]
  %v64 = vld [vmem:[%s1 + $0x64] sm:$0xf]
  %v65 = vld [vmem:[%s1 + $0x68] sm:$0xf]
  %v66 = vld [vmem:[%s1 + $0x6c] sm:$0xf]
  %v67 = vld [vmem:[%s1 + $0x70] sm:$0xf]
  %v68 = vld [vmem:[%s1 + $0x74] sm:$0xf]
  %v69 = vld [vmem:[%s1 + $0x78] sm:$0xf]
  %v70 = vld [vmem:[%s1 + $0x7c] sm:$0xf]
  %v71 = vld [vmem:[%s1 + $0x80] sm:$0xf]
  %v72 = vld [vmem:[%s1 + $0x84] sm:$0xf]
  %v73 = vld [vmem:[%s1 + $0x88] sm:$0xf]
  %v74 = vld [vmem:[%s1 + $0x8c] sm:$0xf]
  %v75 = vld [vmem:[%s1 + $0x90] sm:$0xf]
  %v76 = vld [vmem:[%s1 + $0x94] sm:$0xf]
  %v77 = vld [vmem:[%s1 + $0x98] sm:$0xf]
  %v78 = vld [vmem:[%s1 + $0x9c] sm:$0xf]
  %v79 = vld [vmem:[%s1 + $0xa0] sm:$0xf]
  %v80 = vld [vmem:[%s1 + $0xa4] sm:$0xf]
  %v81 = vld [vmem:[%s1 + $0xa8] sm:$0xf]
  %v82 = vld [vmem:[%s1 + $0xac] sm:$0xf]
  %v83 = vld [vmem:[%s1 + $0xb0] sm:$0xf]
  %v84 = vld [vmem:[%s1 + $0xb4] sm:$0xf]
  %v85 = vld [vmem:[%s1 + $0xb8] sm:$0xf]
  %v86 = vld [vmem:[%s1 + $0xbc] sm:$0xf]
  %v87 = vld [vmem:[%s1 + $0xc0] sm:$0xf]
  %v88 = vld [vmem:[%s1 + $0xc4] sm:$0xf]
  %v89 = vld [vmem:[%s1 + $0xc8] sm:$0xf]
  %v90 = vld [vmem:[%s1 + $0xcc] sm:$0xf]
  %v91 = vld [vmem:[%s1 + $0xd0] sm:$0xf]
  %v92 = vld [vmem:[%s1 + $0xd4] sm:$0xf]
  %v93 = vld [vmem:[%s1 + $0xd8] sm:$0xf]
  %v94 = vld [vmem:[%s1 + $0xdc] sm:$0xf]
  %v95 = vld [vmem:[%s1 + $0xe0] sm:$0xf]
  %v96 = vld [vmem:[%s1 + $0xe4] sm:$0xf]
  %v97 = vld [vmem:[%s1 + $0xe8] sm:$0xf]
  %v98 = vld [vmem:[%s1 + $0xec] sm:$0xf]
  %v99 = vld [vmem:[%s1 + $0xf0] sm:$0xf]
  %v100 = vld [vmem:[%s1 + $0xf4] sm:$0xf]
  %v101 = vld [vmem:[%s1 + $0xf8] sm:$0xf]
  %v102 = vld [vmem:[%s1 + $0xfc] sm:$0xf]
  %v105 = vunpack.c.l.s4 1966171168
  %v106 = vunpack.c.0.s8 %v105
  %v107 = vlaneseq
  %v108 = vshrl.u32 %v107, 7
  %v109 = vsub.s32 %v106, %v108
  %v110 = vrot.slane %v38, %v109
  %v111 = vcombine.high %v110, %v110
  %v113 = vunpack.c.l.s4 1966171168
  %v114 = vunpack.c.0.s8 %v113
  %v115 = vlaneseq
  %v116 = vshrl.u32 %v115, 7
  %v117 = vsub.s32 %v114, %v116
  %v118 = vrot.slane %v110, %v117
  %v120 = vunpack.c.l.s4 1966171168
  %v121 = vunpack.c.0.s8 %v120
  %v122 = vlaneseq
  %v123 = vshrl.u32 %v122, 7
  %v124 = vsub.s32 %v121, %v123
  %v125 = vrot.slane %v111, %v124
  %v126 = vcombine.high %v118, %v118
  %v127 = vcombine.high %v125, %v125
  %v196 = vunpack.c.l.b16 %v39
  %v197 = vunpack.c.l.b16 %v40
  %v198 = vunpack.c.l.b16 %v41
  %v199 = vunpack.c.l.b16 %v42
  %v200 = vunpack.c.l.b16 %v43
  %v201 = vunpack.c.l.b16 %v44
  %v202 = vunpack.c.l.b16 %v45
  %v203 = vunpack.c.l.b16 %v46
  %v204 = vunpack.c.l.b16 %v47
  %v205 = vunpack.c.l.b16 %v48
  %v206 = vunpack.c.l.b16 %v49
  %v207 = vunpack.c.l.b16 %v50
  %v208 = vunpack.c.l.b16 %v51
  %v209 = vunpack.c.l.b16 %v52
  %v210 = vunpack.c.l.b16 %v53
  %v211 = vunpack.c.l.b16 %v54
  %v212 = vunpack.c.l.b16 %v55
  %v213 = vunpack.c.l.b16 %v56
  %v214 = vunpack.c.l.b16 %v57
  %v215 = vunpack.c.l.b16 %v58
  %v216 = vunpack.c.l.b16 %v59
  %v217 = vunpack.c.l.b16 %v60
  %v218 = vunpack.c.l.b16 %v61
  %v219 = vunpack.c.l.b16 %v62
  %v220 = vunpack.c.l.b16 %v63
  %v221 = vunpack.c.l.b16 %v64
  %v222 = vunpack.c.l.b16 %v65
  %v223 = vunpack.c.l.b16 %v66
  %v224 = vunpack.c.l.b16 %v67
  %v225 = vunpack.c.l.b16 %v68
  %v226 = vunpack.c.l.b16 %v69
  %v227 = vunpack.c.l.b16 %v70
  %v228 = vunpack.c.l.b16 %v71
  %v229 = vunpack.c.l.b16 %v72
  %v230 = vunpack.c.l.b16 %v73
  %v231 = vunpack.c.l.b16 %v74
  %v232 = vunpack.c.l.b16 %v75
  %v233 = vunpack.c.l.b16 %v76
  %v234 = vunpack.c.l.b16 %v77
  %v235 = vunpack.c.l.b16 %v78
  %v236 = vunpack.c.l.b16 %v79
  %v237 = vunpack.c.l.b16 %v80
  %v238 = vunpack.c.l.b16 %v81
  %v239 = vunpack.c.l.b16 %v82
  %v240 = vunpack.c.l.b16 %v83
  %v241 = vunpack.c.l.b16 %v84
  %v242 = vunpack.c.l.b16 %v85
  %v243 = vunpack.c.l.b16 %v86
  %v244 = vunpack.c.l.b16 %v87
  %v245 = vunpack.c.l.b16 %v88
  %v246 = vunpack.c.l.b16 %v89
  %v247 = vunpack.c.l.b16 %v90
  %v248 = vunpack.c.l.b16 %v91
  %v249 = vunpack.c.l.b16 %v92
  %v250 = vunpack.c.l.b16 %v93
  %v251 = vunpack.c.l.b16 %v94
  %v252 = vunpack.c.l.b16 %v95
  %v253 = vunpack.c.l.b16 %v96
  %v254 = vunpack.c.l.b16 %v97
  %v255 = vunpack.c.l.b16 %v98
  %v256 = vunpack.c.l.b16 %v99
  %v257 = vunpack.c.l.b16 %v100
  %v258 = vunpack.c.l.b16 %v101
  %v259 = vunpack.c.l.b16 %v102
  %v260 = vpack.c.b16 %v197, %v196
  %v261 = vpack.c.b16 %v199, %v198
  %v262 = vpack.c.b16 %v201, %v200
  %v263 = vpack.c.b16 %v203, %v202
  %v264 = vpack.c.b16 %v205, %v204
  %v265 = vpack.c.b16 %v207, %v206
  %v266 = vpack.c.b16 %v209, %v208
  %v267 = vpack.c.b16 %v211, %v210
  %v268 = vpack.c.b16 %v213, %v212
  %v269 = vpack.c.b16 %v215, %v214
  %v270 = vpack.c.b16 %v217, %v216
  %v271 = vpack.c.b16 %v219, %v218
  %v272 = vpack.c.b16 %v221, %v220
  %v273 = vpack.c.b16 %v223, %v222
  %v274 = vpack.c.b16 %v225, %v224
  %v275 = vpack.c.b16 %v227, %v226
  %v276 = vpack.c.b16 %v229, %v228
  %v277 = vpack.c.b16 %v231, %v230
  %v278 = vpack.c.b16 %v233, %v232
  %v279 = vpack.c.b16 %v235, %v234
  %v280 = vpack.c.b16 %v237, %v236
  %v281 = vpack.c.b16 %v239, %v238
  %v282 = vpack.c.b16 %v241, %v240
  %v283 = vpack.c.b16 %v243, %v242
  %v284 = vpack.c.b16 %v245, %v244
  %v285 = vpack.c.b16 %v247, %v246
  %v286 = vpack.c.b16 %v249, %v248
  %v287 = vpack.c.b16 %v251, %v250
  %v288 = vpack.c.b16 %v253, %v252
  %v289 = vpack.c.b16 %v255, %v254
  %v290 = vpack.c.b16 %v257, %v256
  %v291 = vpack.c.b16 %v259, %v258
  %324 = vmatprep.subr.bf16.mxu0 0
  %325 = vmatpush1.bf16.msra.mxu0 %v260
  %326 = vmatprep.subr.bf16.mxu0 0
  %327 = vmatpush1.bf16.msra.mxu0 %v261
  %328 = vmatprep.subr.bf16.mxu0 0
  %329 = vmatpush1.bf16.msra.mxu0 %v262
  %330 = vmatprep.subr.bf16.mxu0 0
  %331 = vmatpush1.bf16.msra.mxu0 %v263
  %332 = vmatprep.subr.bf16.mxu0 0
  %333 = vmatpush1.bf16.msra.mxu0 %v264
  %334 = vmatprep.subr.bf16.mxu0 0
  %335 = vmatpush1.bf16.msra.mxu0 %v265
  %336 = vmatprep.subr.bf16.mxu0 0
  %337 = vmatpush1.bf16.msra.mxu0 %v266
  %338 = vmatprep.subr.bf16.mxu0 0
  %339 = vmatpush1.bf16.msra.mxu0 %v267
  %340 = vmatprep.subr.bf16.mxu0 0
  %341 = vmatpush1.bf16.msra.mxu0 %v268
  %342 = vmatprep.subr.bf16.mxu0 0
  %343 = vmatpush1.bf16.msra.mxu0 %v269
  %344 = vmatprep.subr.bf16.mxu0 0
  %345 = vmatpush1.bf16.msra.mxu0 %v270
  %346 = vmatprep.subr.bf16.mxu0 0
  %347 = vmatpush1.bf16.msra.mxu0 %v271
  %348 = vmatprep.subr.bf16.mxu0 0
  %349 = vmatpush1.bf16.msra.mxu0 %v272
  %350 = vmatprep.subr.bf16.mxu0 0
  %351 = vmatpush1.bf16.msra.mxu0 %v273
  %352 = vmatprep.subr.bf16.mxu0 0
  %353 = vmatpush1.bf16.msra.mxu0 %v274
  %354 = vmatprep.subr.bf16.mxu0 0
  %355 = vmatpush1.bf16.msra.mxu0 %v275
  %356 = vmatprep.mubr.bf16.mxu0 %v125
  %357 = vmatmul.mubr.bf16.gmra.mrb[0].mxu0 %v118
  %v358 = vpop.f32.mrb[0].mxu0
  %v359 = vadd.f32 0.0, %v358
  %v360 = vpop.f32.mrb[0].mxu0
  %v361 = vpop.f32.mrb[0].mxu0
  %v362 = vpop.f32.mrb[0].mxu0
  %363 = vdwg.mxu0
  %364 = vmatprep.subr.bf16.mxu0 0
  %365 = vmatpush1.bf16.msra.mxu0 %v276
  %366 = vmatprep.subr.bf16.mxu0 0
  %367 = vmatpush1.bf16.msra.mxu0 %v277
  %368 = vmatprep.subr.bf16.mxu0 0
  %369 = vmatpush1.bf16.msra.mxu0 %v278
  %370 = vmatprep.subr.bf16.mxu0 0
  %371 = vmatpush1.bf16.msra.mxu0 %v279
  %372 = vmatprep.subr.bf16.mxu0 0
  %373 = vmatpush1.bf16.msra.mxu0 %v280
  %374 = vmatprep.subr.bf16.mxu0 0
  %375 = vmatpush1.bf16.msra.mxu0 %v281
  %376 = vmatprep.subr.bf16.mxu0 0
  %377 = vmatpush1.bf16.msra.mxu0 %v282
  %378 = vmatprep.subr.bf16.mxu0 0
  %379 = vmatpush1.bf16.msra.mxu0 %v283
  %380 = vmatprep.subr.bf16.mxu0 0
  %381 = vmatpush1.bf16.msra.mxu0 %v284
  %382 = vmatprep.subr.bf16.mxu0 0
  %383 = vmatpush1.bf16.msra.mxu0 %v285
  %384 = vmatprep.subr.bf16.mxu0 0
  %385 = vmatpush1.bf16.msra.mxu0 %v286
  %386 = vmatprep.subr.bf16.mxu0 0
  %387 = vmatpush1.bf16.msra.mxu0 %v287
  %388 = vmatprep.subr.bf16.mxu0 0
  %389 = vmatpush1.bf16.msra.mxu0 %v288
  %390 = vmatprep.subr.bf16.mxu0 0
  %391 = vmatpush1.bf16.msra.mxu0 %v289
  %392 = vmatprep.subr.bf16.mxu0 0
  %393 = vmatpush1.bf16.msra.mxu0 %v290
  %394 = vmatprep.subr.bf16.mxu0 0
  %395 = vmatpush1.bf16.msra.mxu0 %v291
  %396 = vmatprep.mubr.bf16.mxu0 %v127
  %397 = vmatmul.mubr.bf16.gmra.mrb[0].mxu0 %v126
  %v398 = vpop.f32.mrb[0].mxu0
  %v399 = vadd.f32 %v359, %v398
  %v400 = vpop.f32.mrb[0].mxu0
  %v401 = vpop.f32.mrb[0].mxu0
  %v402 = vpop.f32.mrb[0].mxu0
  %403 = vdwg.mxu0
  %vm404 = vcmask 1041408
  %v405 = vsel %vm404, %v399, 0.0
  %v406 = vrot.slane %v405, 4
  %v407 = vadd.f32 %v405, %v406
  %v408 = vrot.slane %v407, 2
  %v409 = vadd.f32 %v407, %v408
  %v410 = vrot.slane %v409, 1
  %v411 = vadd.f32 %v409, %v410
  %v412 = vrcp.pop 2.0
  %v413 = vmul.f32 %v411, %v412
  %v414 = vsub.f32 %v399, %v413
  %v415 = vmul.f32 %v414, %v414
  %v416 = vsel %vm404, %v415, 0.0
  %v417 = vrot.slane %v416, 4
  %v418 = vadd.f32 %v416, %v417
  %v419 = vrot.slane %v418, 2
  %v420 = vadd.f32 %v418, %v419
  %v421 = vrot.slane %v420, 1
  %v422 = vadd.f32 %v420, %v421
  %v423 = vmul.f32 %v422, %v412
  %v424 = vadd.f32 %v423, 1e-05
  %v425 = vrsqrt.pop %v424
  %v426 = vmul.f32 %v414, %v425
  %v427 = vlaneseq
  %v428 = vshrl.u32 %v427, 7
  %v429 = vsub.s32 0, %v428
  %v430 = vrot.slane %v35, %v429
  %v431 = vmul.f32 %v426, %v430
  %v432 = vlaneseq
  %v433 = vshrl.u32 %v432, 7
  %v434 = vsub.s32 1, %v433
  %v435 = vrot.slane %v35, %v434
  %v436 = vadd.f32 %v431, %v435
  %v437 = vmax.f32 %v436, 0.0
  %v438 = vpack.c.bf16 %v437, %v437
  %v439 = vld [vmem:[%s2] sm:$0xf]
  %v440 = vld [vmem:[%s2 + $0x4] sm:$0xf]
  %v441 = vld [vmem:[%s2 + $0x8] sm:$0xf]
  %v442 = vld [vmem:[%s2 + $0xc] sm:$0xf]
  %v443 = vld [vmem:[%s2 + $0x10] sm:$0xf]
  %v444 = vld [vmem:[%s2 + $0x14] sm:$0xf]
  %v445 = vld [vmem:[%s2 + $0x18] sm:$0xf]
  %v446 = vld [vmem:[%s2 + $0x1c] sm:$0xf]
  %v447 = vld [vmem:[%s2 + $0x20] sm:$0xf]
  %v448 = vld [vmem:[%s2 + $0x24] sm:$0xf]
  %v449 = vld [vmem:[%s2 + $0x28] sm:$0xf]
  %v450 = vld [vmem:[%s2 + $0x2c] sm:$0xf]
  %v451 = vld [vmem:[%s2 + $0x30] sm:$0xf]
  %v452 = vld [vmem:[%s2 + $0x34] sm:$0xf]
  %v453 = vld [vmem:[%s2 + $0x38] sm:$0xf]
  %v454 = vld [vmem:[%s2 + $0x3c] sm:$0xf]
  %v471 = vunpack.c.l.b16 %v439
  %v472 = vunpack.c.l.b16 %v440
  %v473 = vunpack.c.l.b16 %v441
  %v474 = vunpack.c.l.b16 %v442
  %v475 = vunpack.c.l.b16 %v443
  %v476 = vunpack.c.l.b16 %v444
  %v477 = vunpack.c.l.b16 %v445
  %v478 = vunpack.c.l.b16 %v446
  %v479 = vunpack.c.l.b16 %v447
  %v480 = vunpack.c.l.b16 %v448
  %v481 = vunpack.c.l.b16 %v449
  %v482 = vunpack.c.l.b16 %v450
  %v483 = vunpack.c.l.b16 %v451
  %v484 = vunpack.c.l.b16 %v452
  %v485 = vunpack.c.l.b16 %v453
  %v486 = vunpack.c.l.b16 %v454
  %v487 = vpack.c.b16 %v472, %v471
  %v488 = vpack.c.b16 %v474, %v473
  %v489 = vpack.c.b16 %v476, %v475
  %v490 = vpack.c.b16 %v478, %v477
  %v491 = vpack.c.b16 %v480, %v479
  %v492 = vpack.c.b16 %v482, %v481
  %v493 = vpack.c.b16 %v484, %v483
  %v494 = vpack.c.b16 %v486, %v485
  %503 = vmatprep.subr.bf16.mxu0 0
  %504 = vmatpush1.bf16.msra.mxu0 %v487
  %505 = vmatprep.subr.bf16.mxu0 0
  %506 = vmatpush1.bf16.msra.mxu0 %v488
  %507 = vmatprep.subr.bf16.mxu0 0
  %508 = vmatpush1.bf16.msra.mxu0 %v489
  %509 = vmatprep.subr.bf16.mxu0 0
  %510 = vmatpush1.bf16.msra.mxu0 %v490
  %511 = vmatprep.subr.bf16.mxu0 0
  %512 = vmatpush1.bf16.msra.mxu0 %v491
  %513 = vmatprep.subr.bf16.mxu0 0
  %514 = vmatpush1.bf16.msra.mxu0 %v492
  %515 = vmatprep.subr.bf16.mxu0 0
  %516 = vmatpush1.bf16.msra.mxu0 %v493
  %517 = vmatprep.subr.bf16.mxu0 0
  %518 = vmatpush1.bf16.msra.mxu0 %v494
  %519 = vmatprep.subr.bf16.mxu0 0
  %520 = vmatpush1.bf16.msra.mxu0 0
  %521 = vmatprep.subr.bf16.mxu0 0
  %522 = vmatpush1.bf16.msra.mxu0 0
  %523 = vmatprep.subr.bf16.mxu0 0
  %524 = vmatpush1.bf16.msra.mxu0 0
  %525 = vmatprep.subr.bf16.mxu0 0
  %526 = vmatpush1.bf16.msra.mxu0 0
  %527 = vmatprep.subr.bf16.mxu0 0
  %528 = vmatpush1.bf16.msra.mxu0 0
  %529 = vmatprep.subr.bf16.mxu0 0
  %530 = vmatpush1.bf16.msra.mxu0 0
  %531 = vmatprep.subr.bf16.mxu0 0
  %532 = vmatpush1.bf16.msra.mxu0 0
  %533 = vmatprep.subr.bf16.mxu0 0
  %534 = vmatpush1.bf16.msra.mxu0 0
  %535 = vmatprep.mubr.bf16.mxu0 0
  %536 = vmatmul.mubr.bf16.gmra.mrb[0].mxu0 %v438
  %v537 = vpop.f32.mrb[0].mxu0
  %v538 = vadd.f32 0.0, %v537
  %v539 = vpop.f32.mrb[0].mxu0
  %v540 = vpop.f32.mrb[0].mxu0
  %v541 = vpop.f32.mrb[0].mxu0
  %542 = vdwg.mxu0
  %v543 = vsel %vm404, %v538, 0.0
  %v544 = vrot.slane %v543, 4
  %v545 = vadd.f32 %v543, %v544
  %v546 = vrot.slane %v545, 2
  %v547 = vadd.f32 %v545, %v546
  %v548 = vrot.slane %v547, 1
  %v549 = vadd.f32 %v547, %v548
  %v550 = vmul.f32 %v549, %v412
  %v551 = vsub.f32 %v538, %v550
  %v552 = vmul.f32 %v551, %v551
  %v553 = vsel %vm404, %v552, 0.0
  %v554 = vrot.slane %v553, 4
  %v555 = vadd.f32 %v553, %v554
  %v556 = vrot.slane %v555, 2
  %v557 = vadd.f32 %v555, %v556
  %v558 = vrot.slane %v557, 1
  %v559 = vadd.f32 %v557, %v558
  %v560 = vmul.f32 %v559, %v412
  %v561 = vadd.f32 %v560, 1e-05
  %v562 = vrsqrt.pop %v561
  %v563 = vmul.f32 %v551, %v562
  %v564 = vlaneseq
  %v565 = vshrl.u32 %v564, 7
  %v566 = vsub.s32 2, %v565
  %v567 = vrot.slane %v35, %v566
  %v568 = vmul.f32 %v563, %v567
  %v569 = vlaneseq
  %v570 = vshrl.u32 %v569, 7
  %v571 = vsub.s32 3, %v570
  %v572 = vrot.slane %v35, %v571
  %v573 = vadd.f32 %v568, %v572
  %v574 = vmax.f32 %v573, 0.0
  %v575 = vpack.c.bf16 %v574, %v574
  %v576 = vld [vmem:[%s3] sm:$0xf]
  %v577 = vld [vmem:[%s3 + $0x4] sm:$0xf]
  %v578 = vld [vmem:[%s3 + $0x8] sm:$0xf]
  %v579 = vld [vmem:[%s3 + $0xc] sm:$0xf]
  %v580 = vld [vmem:[%s3 + $0x10] sm:$0xf]
  %v581 = vld [vmem:[%s3 + $0x14] sm:$0xf]
  %v582 = vld [vmem:[%s3 + $0x18] sm:$0xf]
  %v583 = vld [vmem:[%s3 + $0x1c] sm:$0xf]
  %v584 = vld [vmem:[%s3 + $0x20] sm:$0xf]
  %v585 = vld [vmem:[%s3 + $0x24] sm:$0xf]
  %v586 = vld [vmem:[%s3 + $0x28] sm:$0xf]
  %v587 = vld [vmem:[%s3 + $0x2c] sm:$0xf]
  %v588 = vld [vmem:[%s3 + $0x30] sm:$0xf]
  %v589 = vld [vmem:[%s3 + $0x34] sm:$0xf]
  %v590 = vld [vmem:[%s3 + $0x38] sm:$0xf]
  %v591 = vld [vmem:[%s3 + $0x3c] sm:$0xf]
  %v608 = vunpack.c.l.b16 %v576
  %v609 = vunpack.c.l.b16 %v577
  %v610 = vunpack.c.l.b16 %v578
  %v611 = vunpack.c.l.b16 %v579
  %v612 = vunpack.c.l.b16 %v580
  %v613 = vunpack.c.l.b16 %v581
  %v614 = vunpack.c.l.b16 %v582
  %v615 = vunpack.c.l.b16 %v583
  %v616 = vunpack.c.l.b16 %v584
  %v617 = vunpack.c.l.b16 %v585
  %v618 = vunpack.c.l.b16 %v586
  %v619 = vunpack.c.l.b16 %v587
  %v620 = vunpack.c.l.b16 %v588
  %v621 = vunpack.c.l.b16 %v589
  %v622 = vunpack.c.l.b16 %v590
  %v623 = vunpack.c.l.b16 %v591
  %v624 = vpack.c.b16 %v609, %v608
  %v625 = vpack.c.b16 %v611, %v610
  %v626 = vpack.c.b16 %v613, %v612
  %v627 = vpack.c.b16 %v615, %v614
  %v628 = vpack.c.b16 %v617, %v616
  %v629 = vpack.c.b16 %v619, %v618
  %v630 = vpack.c.b16 %v621, %v620
  %v631 = vpack.c.b16 %v623, %v622
  %640 = vmatprep.subr.bf16.mxu0 0
  %641 = vmatpush1.bf16.msra.mxu0 %v624
  %642 = vmatprep.subr.bf16.mxu0 0
  %643 = vmatpush1.bf16.msra.mxu0 %v625
  %644 = vmatprep.subr.bf16.mxu0 0
  %645 = vmatpush1.bf16.msra.mxu0 %v626
  %646 = vmatprep.subr.bf16.mxu0 0
  %647 = vmatpush1.bf16.msra.mxu0 %v627
  %648 = vmatprep.subr.bf16.mxu0 0
  %649 = vmatpush1.bf16.msra.mxu0 %v628
  %650 = vmatprep.subr.bf16.mxu0 0
  %651 = vmatpush1.bf16.msra.mxu0 %v629
  %652 = vmatprep.subr.bf16.mxu0 0
  %653 = vmatpush1.bf16.msra.mxu0 %v630
  %654 = vmatprep.subr.bf16.mxu0 0
  %655 = vmatpush1.bf16.msra.mxu0 %v631
  %656 = vmatprep.subr.bf16.mxu0 0
  %657 = vmatpush1.bf16.msra.mxu0 0
  %658 = vmatprep.subr.bf16.mxu0 0
  %659 = vmatpush1.bf16.msra.mxu0 0
  %660 = vmatprep.subr.bf16.mxu0 0
  %661 = vmatpush1.bf16.msra.mxu0 0
  %662 = vmatprep.subr.bf16.mxu0 0
  %663 = vmatpush1.bf16.msra.mxu0 0
  %664 = vmatprep.subr.bf16.mxu0 0
  %665 = vmatpush1.bf16.msra.mxu0 0
  %666 = vmatprep.subr.bf16.mxu0 0
  %667 = vmatpush1.bf16.msra.mxu0 0
  %668 = vmatprep.subr.bf16.mxu0 0
  %669 = vmatpush1.bf16.msra.mxu0 0
  %670 = vmatprep.subr.bf16.mxu0 0
  %671 = vmatpush1.bf16.msra.mxu0 0
  %672 = vmatprep.mubr.bf16.mxu0 0
  %673 = vmatmul.mubr.bf16.gmra.mrb[0].mxu0 %v575
  %v674 = vpop.f32.mrb[0].mxu0
  %v675 = vadd.f32 0.0, %v674
  %v676 = vpop.f32.mrb[0].mxu0
  %v677 = vpop.f32.mrb[0].mxu0
  %v678 = vpop.f32.mrb[0].mxu0
  %679 = vdwg.mxu0
  %v680 = vsel %vm404, %v675, 0.0
  %v681 = vrot.slane %v680, 4
  %v682 = vadd.f32 %v680, %v681
  %v683 = vrot.slane %v682, 2
  %v684 = vadd.f32 %v682, %v683
  %v685 = vrot.slane %v684, 1
  %v686 = vadd.f32 %v684, %v685
  %v687 = vmul.f32 %v686, %v412
  %v688 = vsub.f32 %v675, %v687
  %v689 = vmul.f32 %v688, %v688
  %v690 = vsel %vm404, %v689, 0.0
  %v691 = vrot.slane %v690, 4
  %v692 = vadd.f32 %v690, %v691
  %v693 = vrot.slane %v692, 2
  %v694 = vadd.f32 %v692, %v693
  %v695 = vrot.slane %v694, 1
  %v696 = vadd.f32 %v694, %v695
  %v697 = vmul.f32 %v696, %v412
  %v698 = vadd.f32 %v697, 1e-05
  %v699 = vrsqrt.pop %v698
  %v700 = vmul.f32 %v688, %v699
  %v701 = vlaneseq
  %v702 = vshrl.u32 %v701, 7
  %v703 = vsub.s32 4, %v702
  %v704 = vrot.slane %v35, %v703
  %v705 = vmul.f32 %v700, %v704
  %v706 = vlaneseq
  %v707 = vshrl.u32 %v706, 7
  %v708 = vsub.s32 5, %v707
  %v709 = vrot.slane %v35, %v708
  %v710 = vadd.f32 %v705, %v709
  %v711 = vpack.c.bf16 %v710, %v710
  %v712 = vld [vmem:[%s4] sm:$0xf]
  %v713 = vld [vmem:[%s4 + $0x4] sm:$0xf]
  %v714 = vld [vmem:[%s4 + $0x8] sm:$0xf]
  %v715 = vld [vmem:[%s4 + $0xc] sm:$0xf]
  %v716 = vld [vmem:[%s4 + $0x10] sm:$0xf]
  %v717 = vld [vmem:[%s4 + $0x14] sm:$0xf]
  %v718 = vld [vmem:[%s4 + $0x18] sm:$0xf]
  %v719 = vld [vmem:[%s4 + $0x1c] sm:$0xf]
  %v720 = vld [vmem:[%s4 + $0x20] sm:$0xf]
  %v721 = vld [vmem:[%s4 + $0x24] sm:$0xf]
  %v722 = vld [vmem:[%s4 + $0x28] sm:$0xf]
  %v723 = vld [vmem:[%s4 + $0x2c] sm:$0xf]
  %v724 = vld [vmem:[%s4 + $0x30] sm:$0xf]
  %v725 = vld [vmem:[%s4 + $0x34] sm:$0xf]
  %v726 = vld [vmem:[%s4 + $0x38] sm:$0xf]
  %v727 = vld [vmem:[%s4 + $0x3c] sm:$0xf]
  %v744 = vunpack.c.l.b16 %v712
  %v745 = vunpack.c.l.b16 %v713
  %v746 = vunpack.c.l.b16 %v714
  %v747 = vunpack.c.l.b16 %v715
  %v748 = vunpack.c.l.b16 %v716
  %v749 = vunpack.c.l.b16 %v717
  %v750 = vunpack.c.l.b16 %v718
  %v751 = vunpack.c.l.b16 %v719
  %v752 = vunpack.c.l.b16 %v720
  %v753 = vunpack.c.l.b16 %v721
  %v754 = vunpack.c.l.b16 %v722
  %v755 = vunpack.c.l.b16 %v723
  %v756 = vunpack.c.l.b16 %v724
  %v757 = vunpack.c.l.b16 %v725
  %v758 = vunpack.c.l.b16 %v726
  %v759 = vunpack.c.l.b16 %v727
  %v760 = vpack.c.b16 %v745, %v744
  %v761 = vpack.c.b16 %v747, %v746
  %v762 = vpack.c.b16 %v749, %v748
  %v763 = vpack.c.b16 %v751, %v750
  %v764 = vpack.c.b16 %v753, %v752
  %v765 = vpack.c.b16 %v755, %v754
  %v766 = vpack.c.b16 %v757, %v756
  %v767 = vpack.c.b16 %v759, %v758
  %776 = vmatprep.subr.bf16.mxu0 0
  %777 = vmatpush1.bf16.msra.mxu0 %v760
  %778 = vmatprep.subr.bf16.mxu0 0
  %779 = vmatpush1.bf16.msra.mxu0 %v761
  %780 = vmatprep.subr.bf16.mxu0 0
  %781 = vmatpush1.bf16.msra.mxu0 %v762
  %782 = vmatprep.subr.bf16.mxu0 0
  %783 = vmatpush1.bf16.msra.mxu0 %v763
  %784 = vmatprep.subr.bf16.mxu0 0
  %785 = vmatpush1.bf16.msra.mxu0 %v764
  %786 = vmatprep.subr.bf16.mxu0 0
  %787 = vmatpush1.bf16.msra.mxu0 %v765
  %788 = vmatprep.subr.bf16.mxu0 0
  %789 = vmatpush1.bf16.msra.mxu0 %v766
  %790 = vmatprep.subr.bf16.mxu0 0
  %791 = vmatpush1.bf16.msra.mxu0 %v767
  %792 = vmatprep.subr.bf16.mxu0 0
  %793 = vmatpush1.bf16.msra.mxu0 0
  %794 = vmatprep.subr.bf16.mxu0 0
  %795 = vmatpush1.bf16.msra.mxu0 0
  %796 = vmatprep.subr.bf16.mxu0 0
  %797 = vmatpush1.bf16.msra.mxu0 0
  %798 = vmatprep.subr.bf16.mxu0 0
  %799 = vmatpush1.bf16.msra.mxu0 0
  %800 = vmatprep.subr.bf16.mxu0 0
  %801 = vmatpush1.bf16.msra.mxu0 0
  %802 = vmatprep.subr.bf16.mxu0 0
  %803 = vmatpush1.bf16.msra.mxu0 0
  %804 = vmatprep.subr.bf16.mxu0 0
  %805 = vmatpush1.bf16.msra.mxu0 0
  %806 = vmatprep.subr.bf16.mxu0 0
  %807 = vmatpush1.bf16.msra.mxu0 0
  %808 = vmatprep.mubr.bf16.mxu0 0
  %809 = vmatmul.mubr.bf16.gmra.mrb[0].mxu0 %v711
  %v810 = vpop.f32.mrb[0].mxu0
  %v811 = vadd.f32 0.0, %v810
  %v812 = vpop.f32.mrb[0].mxu0
  %v813 = vpop.f32.mrb[0].mxu0
  %v814 = vpop.f32.mrb[0].mxu0
  %815 = vdwg.mxu0
  %v816 = vsel %vm404, %v811, 0.0
  %v817 = vrot.slane %v816, 4
  %v818 = vadd.f32 %v816, %v817
  %v819 = vrot.slane %v818, 2
  %v820 = vadd.f32 %v818, %v819
  %v821 = vrot.slane %v820, 1
  %v822 = vadd.f32 %v820, %v821
  %v823 = vmul.f32 %v822, %v412
  %v824 = vsub.f32 %v811, %v823
  %v825 = vmul.f32 %v824, %v824
  %v826 = vsel %vm404, %v825, 0.0
  %v827 = vrot.slane %v826, 4
  %v828 = vadd.f32 %v826, %v827
  %v829 = vrot.slane %v828, 2
  %v830 = vadd.f32 %v828, %v829
  %v831 = vrot.slane %v830, 1
  %v832 = vadd.f32 %v830, %v831
  %v833 = vmul.f32 %v832, %v412
  %v834 = vadd.f32 %v833, 1e-05
  %v835 = vrsqrt.pop %v834
  %v836 = vmul.f32 %v824, %v835
  %v837 = vlaneseq
  %v838 = vshrl.u32 %v837, 7
  %v839 = vsub.s32 0, %v838
  %v840 = vrot.slane %v36, %v839
  %v841 = vmul.f32 %v836, %v840
  %v842 = vlaneseq
  %v843 = vshrl.u32 %v842, 7
  %v844 = vsub.s32 1, %v843
  %v845 = vrot.slane %v36, %v844
  %v846 = vadd.f32 %v841, %v845
  %v847 = vmax.f32 %v846, 0.0
  %v848 = vpack.c.bf16 %v847, %v847
  %v849 = vld [vmem:[%s5] sm:$0xf]
  %v850 = vld [vmem:[%s5 + $0x4] sm:$0xf]
  %v851 = vld [vmem:[%s5 + $0x8] sm:$0xf]
  %v852 = vld [vmem:[%s5 + $0xc] sm:$0xf]
  %v853 = vld [vmem:[%s5 + $0x10] sm:$0xf]
  %v854 = vld [vmem:[%s5 + $0x14] sm:$0xf]
  %v855 = vld [vmem:[%s5 + $0x18] sm:$0xf]
  %v856 = vld [vmem:[%s5 + $0x1c] sm:$0xf]
  %v857 = vld [vmem:[%s5 + $0x20] sm:$0xf]
  %v858 = vld [vmem:[%s5 + $0x24] sm:$0xf]
  %v859 = vld [vmem:[%s5 + $0x28] sm:$0xf]
  %v860 = vld [vmem:[%s5 + $0x2c] sm:$0xf]
  %v861 = vld [vmem:[%s5 + $0x30] sm:$0xf]
  %v862 = vld [vmem:[%s5 + $0x34] sm:$0xf]
  %v863 = vld [vmem:[%s5 + $0x38] sm:$0xf]
  %v864 = vld [vmem:[%s5 + $0x3c] sm:$0xf]
  %v866 = vlaneseq
  %v867 = vshrl.u32 %v866, 7
  %v868 = vsub.s32 0, %v867
  %v869 = vrot.slane %v37, %v868
  %v887 = vunpack.c.l.b16 %v849
  %v888 = vunpack.c.l.b16 %v850
  %v889 = vunpack.c.l.b16 %v851
  %v890 = vunpack.c.l.b16 %v852
  %v891 = vunpack.c.l.b16 %v853
  %v892 = vunpack.c.l.b16 %v854
  %v893 = vunpack.c.l.b16 %v855
  %v894 = vunpack.c.l.b16 %v856
  %v895 = vunpack.c.l.b16 %v857
  %v896 = vunpack.c.l.b16 %v858
  %v897 = vunpack.c.l.b16 %v859
  %v898 = vunpack.c.l.b16 %v860
  %v899 = vunpack.c.l.b16 %v861
  %v900 = vunpack.c.l.b16 %v862
  %v901 = vunpack.c.l.b16 %v863
  %v902 = vunpack.c.l.b16 %v864
  %v903 = vpack.c.b16 %v888, %v887
  %v904 = vpack.c.b16 %v890, %v889
  %v905 = vpack.c.b16 %v892, %v891
  %v906 = vpack.c.b16 %v894, %v893
  %v907 = vpack.c.b16 %v896, %v895
  %v908 = vpack.c.b16 %v898, %v897
  %v909 = vpack.c.b16 %v900, %v899
  %v910 = vpack.c.b16 %v902, %v901
  %919 = vmatprep.subr.bf16.mxu0 0
  %920 = vmatpush1.bf16.msra.mxu0 %v903
  %921 = vmatprep.subr.bf16.mxu0 0
  %922 = vmatpush1.bf16.msra.mxu0 %v904
  %923 = vmatprep.subr.bf16.mxu0 0
  %924 = vmatpush1.bf16.msra.mxu0 %v905
  %925 = vmatprep.subr.bf16.mxu0 0
  %926 = vmatpush1.bf16.msra.mxu0 %v906
  %927 = vmatprep.subr.bf16.mxu0 0
  %928 = vmatpush1.bf16.msra.mxu0 %v907
  %929 = vmatprep.subr.bf16.mxu0 0
  %930 = vmatpush1.bf16.msra.mxu0 %v908
  %931 = vmatprep.subr.bf16.mxu0 0
  %932 = vmatpush1.bf16.msra.mxu0 %v909
  %933 = vmatprep.subr.bf16.mxu0 0
  %934 = vmatpush1.bf16.msra.mxu0 %v910
  %935 = vmatprep.subr.bf16.mxu0 0
  %936 = vmatpush1.bf16.msra.mxu0 0
  %937 = vmatprep.subr.bf16.mxu0 0
  %938 = vmatpush1.bf16.msra.mxu0 0
  %939 = vmatprep.subr.bf16.mxu0 0
  %940 = vmatpush1.bf16.msra.mxu0 0
  %941 = vmatprep.subr.bf16.mxu0 0
  %942 = vmatpush1.bf16.msra.mxu0 0
  %943 = vmatprep.subr.bf16.mxu0 0
  %944 = vmatpush1.bf16.msra.mxu0 0
  %945 = vmatprep.subr.bf16.mxu0 0
  %946 = vmatpush1.bf16.msra.mxu0 0
  %947 = vmatprep.subr.bf16.mxu0 0
  %948 = vmatpush1.bf16.msra.mxu0 0
  %949 = vmatprep.subr.bf16.mxu0 0
  %950 = vmatpush1.bf16.msra.mxu0 0
  %951 = vmatprep.mubr.bf16.mxu0 0
  %952 = vmatmul.mubr.bf16.gmra.mrb[0].mxu0 %v848
  %v953 = vpop.f32.mrb[0].mxu0
  %v954 = vadd.f32 %v869, %v953
  %v955 = vpop.f32.mrb[0].mxu0
  %v956 = vpop.f32.mrb[0].mxu0
  %v957 = vpop.f32.mrb[0].mxu0
  %958 = vdwg.mxu0
  %959 = vst [vmem:[%s9] sm:$0x3] %v710
  %960 = vst [vmem:[%s10] sm:$0x3] %v954
  %s961 = scalar_lea.vmem %s0, 4
  %v962 = vld [vmem:[%s961] sm:$0xf]
  %v963 = vld [vmem:[%s1] sm:$0xf]
  %v964 = vld [vmem:[%s1 + $0x4] sm:$0xf]
  %v965 = vld [vmem:[%s1 + $0x8] sm:$0xf]
  %v966 = vld [vmem:[%s1 + $0xc] sm:$0xf]
  %v967 = vld [vmem:[%s1 + $0x10] sm:$0xf]
  %v968 = vld [vmem:[%s1 + $0x14] sm:$0xf]
  %v969 = vld [vmem:[%s1 + $0x18] sm:$0xf]
  %v970 = vld [vmem:[%s1 + $0x1c] sm:$0xf]
  %v971 = vld [vmem:[%s1 + $0x20] sm:$0xf]
  %v972 = vld [vmem:[%s1 + $0x24] sm:$0xf]
  %v973 = vld [vmem:[%s1 + $0x28] sm:$0xf]
  %v974 = vld [vmem:[%s1 + $0x2c] sm:$0xf]
  %v975 = vld [vmem:[%s1 + $0x30] sm:$0xf]
  %v976 = vld [vmem:[%s1 + $0x34] sm:$0xf]
  %v977 = vld [vmem:[%s1 + $0x38] sm:$0xf]
  %v978 = vld [vmem:[%s1 + $0x3c] sm:$0xf]
  %v979 = vld [vmem:[%s1 + $0x40] sm:$0xf]
  %v980 = vld [vmem:[%s1 + $0x44] sm:$0xf]
  %v981 = vld [vmem:[%s1 + $0x48] sm:$0xf]
  %v982 = vld [vmem:[%s1 + $0x4c] sm:$0xf]
  %v983 = vld [vmem:[%s1 + $0x50] sm:$0xf]
  %v984 = vld [vmem:[%s1 + $0x54] sm:$0xf]
  %v985 = vld [vmem:[%s1 + $0x58] sm:$0xf]
  %v986 = vld [vmem:[%s1 + $0x5c] sm:$0xf]
  %v987 = vld [vmem:[%s1 + $0x60] sm:$0xf]
  %v988 = vld [vmem:[%s1 + $0x64] sm:$0xf]
  %v989 = vld [vmem:[%s1 + $0x68] sm:$0xf]
  %v990 = vld [vmem:[%s1 + $0x6c] sm:$0xf]
  %v991 = vld [vmem:[%s1 + $0x70] sm:$0xf]
  %v992 = vld [vmem:[%s1 + $0x74] sm:$0xf]
  %v993 = vld [vmem:[%s1 + $0x78] sm:$0xf]
  %v994 = vld [vmem:[%s1 + $0x7c] sm:$0xf]
  %v995 = vld [vmem:[%s1 + $0x80] sm:$0xf]
  %v996 = vld [vmem:[%s1 + $0x84] sm:$0xf]
  %v997 = vld [vmem:[%s1 + $0x88] sm:$0xf]
  %v998 = vld [vmem:[%s1 + $0x8c] sm:$0xf]
  %v999 = vld [vmem:[%s1 + $0x90] sm:$0xf]
  %v1000 = vld [vmem:[%s1 + $0x94] sm:$0xf]
  %v1001 = vld [vmem:[%s1 + $0x98] sm:$0xf]
  %v1002 = vld [vmem:[%s1 + $0x9c] sm:$0xf]
  %v1003 = vld [vmem:[%s1 + $0xa0] sm:$0xf]
  %v1004 = vld [vmem:[%s1 + $0xa4] sm:$0xf]
  %v1005 = vld [vmem:[%s1 + $0xa8] sm:$0xf]
  %v1006 = vld [vmem:[%s1 + $0xac] sm:$0xf]
  %v1007 = vld [vmem:[%s1 + $0xb0] sm:$0xf]
  %v1008 = vld [vmem:[%s1 + $0xb4] sm:$0xf]
  %v1009 = vld [vmem:[%s1 + $0xb8] sm:$0xf]
  %v1010 = vld [vmem:[%s1 + $0xbc] sm:$0xf]
  %v1011 = vld [vmem:[%s1 + $0xc0] sm:$0xf]
  %v1012 = vld [vmem:[%s1 + $0xc4] sm:$0xf]
  %v1013 = vld [vmem:[%s1 + $0xc8] sm:$0xf]
  %v1014 = vld [vmem:[%s1 + $0xcc] sm:$0xf]
  %v1015 = vld [vmem:[%s1 + $0xd0] sm:$0xf]
  %v1016 = vld [vmem:[%s1 + $0xd4] sm:$0xf]
  %v1017 = vld [vmem:[%s1 + $0xd8] sm:$0xf]
  %v1018 = vld [vmem:[%s1 + $0xdc] sm:$0xf]
  %v1019 = vld [vmem:[%s1 + $0xe0] sm:$0xf]
  %v1020 = vld [vmem:[%s1 + $0xe4] sm:$0xf]
  %v1021 = vld [vmem:[%s1 + $0xe8] sm:$0xf]
  %v1022 = vld [vmem:[%s1 + $0xec] sm:$0xf]
  %v1023 = vld [vmem:[%s1 + $0xf0] sm:$0xf]
  %v1024 = vld [vmem:[%s1 + $0xf4] sm:$0xf]
  %v1025 = vld [vmem:[%s1 + $0xf8] sm:$0xf]
  %v1026 = vld [vmem:[%s1 + $0xfc] sm:$0xf]
  %v1029 = vunpack.c.l.s4 1966171168
  %v1030 = vunpack.c.0.s8 %v1029
  %v1031 = vlaneseq
  %v1032 = vshrl.u32 %v1031, 7
  %v1033 = vsub.s32 %v1030, %v1032
  %v1034 = vrot.slane %v962, %v1033
  %v1035 = vcombine.high %v1034, %v1034
  %v1037 = vunpack.c.l.s4 1966171168
  %v1038 = vunpack.c.0.s8 %v1037
  %v1039 = vlaneseq
  %v1040 = vshrl.u32 %v1039, 7
  %v1041 = vsub.s32 %v1038, %v1040
  %v1042 = vrot.slane %v1034, %v1041
  %v1044 = vunpack.c.l.s4 1966171168
  %v1045 = vunpack.c.0.s8 %v1044
  %v1046 = vlaneseq
  %v1047 = vshrl.u32 %v1046, 7
  %v1048 = vsub.s32 %v1045, %v1047
  %v1049 = vrot.slane %v1035, %v1048
  %v1050 = vcombine.high %v1042, %v1042
  %v1051 = vcombine.high %v1049, %v1049
  %v1120 = vunpack.c.l.b16 %v963
  %v1121 = vunpack.c.l.b16 %v964
  %v1122 = vunpack.c.l.b16 %v965
  %v1123 = vunpack.c.l.b16 %v966
  %v1124 = vunpack.c.l.b16 %v967
  %v1125 = vunpack.c.l.b16 %v968
  %v1126 = vunpack.c.l.b16 %v969
  %v1127 = vunpack.c.l.b16 %v970
  %v1128 = vunpack.c.l.b16 %v971
  %v1129 = vunpack.c.l.b16 %v972
  %v1130 = vunpack.c.l.b16 %v973
  %v1131 = vunpack.c.l.b16 %v974
  %v1132 = vunpack.c.l.b16 %v975
  %v1133 = vunpack.c.l.b16 %v976
  %v1134 = vunpack.c.l.b16 %v977
  %v1135 = vunpack.c.l.b16 %v978
  %v1136 = vunpack.c.l.b16 %v979
  %v1137 = vunpack.c.l.b16 %v980
  %v1138 = vunpack.c.l.b16 %v981
  %v1139 = vunpack.c.l.b16 %v982
  %v1140 = vunpack.c.l.b16 %v983
  %v1141 = vunpack.c.l.b16 %v984
  %v1142 = vunpack.c.l.b16 %v985
  %v1143 = vunpack.c.l.b16 %v986
  %v1144 = vunpack.c.l.b16 %v987
  %v1145 = vunpack.c.l.b16 %v988
  %v1146 = vunpack.c.l.b16 %v989
  %v1147 = vunpack.c.l.b16 %v990
  %v1148 = vunpack.c.l.b16 %v991
  %v1149 = vunpack.c.l.b16 %v992
  %v1150 = vunpack.c.l.b16 %v993
  %v1151 = vunpack.c.l.b16 %v994
  %v1152 = vunpack.c.l.b16 %v995
  %v1153 = vunpack.c.l.b16 %v996
  %v1154 = vunpack.c.l.b16 %v997
  %v1155 = vunpack.c.l.b16 %v998
  %v1156 = vunpack.c.l.b16 %v999
  %v1157 = vunpack.c.l.b16 %v1000
  %v1158 = vunpack.c.l.b16 %v1001
  %v1159 = vunpack.c.l.b16 %v1002
  %v1160 = vunpack.c.l.b16 %v1003
  %v1161 = vunpack.c.l.b16 %v1004
  %v1162 = vunpack.c.l.b16 %v1005
  %v1163 = vunpack.c.l.b16 %v1006
  %v1164 = vunpack.c.l.b16 %v1007
  %v1165 = vunpack.c.l.b16 %v1008
  %v1166 = vunpack.c.l.b16 %v1009
  %v1167 = vunpack.c.l.b16 %v1010
  %v1168 = vunpack.c.l.b16 %v1011
  %v1169 = vunpack.c.l.b16 %v1012
  %v1170 = vunpack.c.l.b16 %v1013
  %v1171 = vunpack.c.l.b16 %v1014
  %v1172 = vunpack.c.l.b16 %v1015
  %v1173 = vunpack.c.l.b16 %v1016
  %v1174 = vunpack.c.l.b16 %v1017
  %v1175 = vunpack.c.l.b16 %v1018
  %v1176 = vunpack.c.l.b16 %v1019
  %v1177 = vunpack.c.l.b16 %v1020
  %v1178 = vunpack.c.l.b16 %v1021
  %v1179 = vunpack.c.l.b16 %v1022
  %v1180 = vunpack.c.l.b16 %v1023
  %v1181 = vunpack.c.l.b16 %v1024
  %v1182 = vunpack.c.l.b16 %v1025
  %v1183 = vunpack.c.l.b16 %v1026
  %v1184 = vpack.c.b16 %v1121, %v1120
  %v1185 = vpack.c.b16 %v1123, %v1122
  %v1186 = vpack.c.b16 %v1125, %v1124
  %v1187 = vpack.c.b16 %v1127, %v1126
  %v1188 = vpack.c.b16 %v1129, %v1128
  %v1189 = vpack.c.b16 %v1131, %v1130
  %v1190 = vpack.c.b16 %v1133, %v1132
  %v1191 = vpack.c.b16 %v1135, %v1134
  %v1192 = vpack.c.b16 %v1137, %v1136
  %v1193 = vpack.c.b16 %v1139, %v1138
  %v1194 = vpack.c.b16 %v1141, %v1140
  %v1195 = vpack.c.b16 %v1143, %v1142
  %v1196 = vpack.c.b16 %v1145, %v1144
  %v1197 = vpack.c.b16 %v1147, %v1146
  %v1198 = vpack.c.b16 %v1149, %v1148
  %v1199 = vpack.c.b16 %v1151, %v1150
  %v1200 = vpack.c.b16 %v1153, %v1152
  %v1201 = vpack.c.b16 %v1155, %v1154
  %v1202 = vpack.c.b16 %v1157, %v1156
  %v1203 = vpack.c.b16 %v1159, %v1158
  %v1204 = vpack.c.b16 %v1161, %v1160
  %v1205 = vpack.c.b16 %v1163, %v1162
  %v1206 = vpack.c.b16 %v1165, %v1164
  %v1207 = vpack.c.b16 %v1167, %v1166
  %v1208 = vpack.c.b16 %v1169, %v1168
  %v1209 = vpack.c.b16 %v1171, %v1170
  %v1210 = vpack.c.b16 %v1173, %v1172
  %v1211 = vpack.c.b16 %v1175, %v1174
  %v1212 = vpack.c.b16 %v1177, %v1176
  %v1213 = vpack.c.b16 %v1179, %v1178
  %v1214 = vpack.c.b16 %v1181, %v1180
  %v1215 = vpack.c.b16 %v1183, %v1182
  %1248 = vmatprep.subr.bf16.mxu0 0
  %1249 = vmatpush1.bf16.msra.mxu0 %v1184
  %1250 = vmatprep.subr.bf16.mxu0 0
  %1251 = vmatpush1.bf16.msra.mxu0 %v1185
  %1252 = vmatprep.subr.bf16.mxu0 0
  %1253 = vmatpush1.bf16.msra.mxu0 %v1186
  %1254 = vmatprep.subr.bf16.mxu0 0
  %1255 = vmatpush1.bf16.msra.mxu0 %v1187
  %1256 = vmatprep.subr.bf16.mxu0 0
  %1257 = vmatpush1.bf16.msra.mxu0 %v1188
  %1258 = vmatprep.subr.bf16.mxu0 0
  %1259 = vmatpush1.bf16.msra.mxu0 %v1189
  %1260 = vmatprep.subr.bf16.mxu0 0
  %1261 = vmatpush1.bf16.msra.mxu0 %v1190
  %1262 = vmatprep.subr.bf16.mxu0 0
  %1263 = vmatpush1.bf16.msra.mxu0 %v1191
  %1264 = vmatprep.subr.bf16.mxu0 0
  %1265 = vmatpush1.bf16.msra.mxu0 %v1192
  %1266 = vmatprep.subr.bf16.mxu0 0
  %1267 = vmatpush1.bf16.msra.mxu0 %v1193
  %1268 = vmatprep.subr.bf16.mxu0 0
  %1269 = vmatpush1.bf16.msra.mxu0 %v1194
  %1270 = vmatprep.subr.bf16.mxu0 0
  %1271 = vmatpush1.bf16.msra.mxu0 %v1195
  %1272 = vmatprep.subr.bf16.mxu0 0
  %1273 = vmatpush1.bf16.msra.mxu0 %v1196
  %1274 = vmatprep.subr.bf16.mxu0 0
  %1275 = vmatpush1.bf16.msra.mxu0 %v1197
  %1276 = vmatprep.subr.bf16.mxu0 0
  %1277 = vmatpush1.bf16.msra.mxu0 %v1198
  %1278 = vmatprep.subr.bf16.mxu0 0
  %1279 = vmatpush1.bf16.msra.mxu0 %v1199
  %1280 = vmatprep.mubr.bf16.mxu0 %v1049
  %1281 = vmatmul.mubr.bf16.gmra.mrb[0].mxu0 %v1042
  %v1282 = vpop.f32.mrb[0].mxu0
  %v1283 = vadd.f32 0.0, %v1282
  %v1284 = vpop.f32.mrb[0].mxu0
  %v1285 = vpop.f32.mrb[0].mxu0
  %v1286 = vpop.f32.mrb[0].mxu0
  %1287 = vdwg.mxu0
  %1288 = vmatprep.subr.bf16.mxu0 0
  %1289 = vmatpush1.bf16.msra.mxu0 %v1200
  %1290 = vmatprep.subr.bf16.mxu0 0
  %1291 = vmatpush1.bf16.msra.mxu0 %v1201
  %1292 = vmatprep.subr.bf16.mxu0 0
  %1293 = vmatpush1.bf16.msra.mxu0 %v1202
  %1294 = vmatprep.subr.bf16.mxu0 0
  %1295 = vmatpush1.bf16.msra.mxu0 %v1203
  %1296 = vmatprep.subr.bf16.mxu0 0
  %1297 = vmatpush1.bf16.msra.mxu0 %v1204
  %1298 = vmatprep.subr.bf16.mxu0 0
  %1299 = vmatpush1.bf16.msra.mxu0 %v1205
  %1300 = vmatprep.subr.bf16.mxu0 0
  %1301 = vmatpush1.bf16.msra.mxu0 %v1206
  %1302 = vmatprep.subr.bf16.mxu0 0
  %1303 = vmatpush1.bf16.msra.mxu0 %v1207
  %1304 = vmatprep.subr.bf16.mxu0 0
  %1305 = vmatpush1.bf16.msra.mxu0 %v1208
  %1306 = vmatprep.subr.bf16.mxu0 0
  %1307 = vmatpush1.bf16.msra.mxu0 %v1209
  %1308 = vmatprep.subr.bf16.mxu0 0
  %1309 = vmatpush1.bf16.msra.mxu0 %v1210
  %1310 = vmatprep.subr.bf16.mxu0 0
  %1311 = vmatpush1.bf16.msra.mxu0 %v1211
  %1312 = vmatprep.subr.bf16.mxu0 0
  %1313 = vmatpush1.bf16.msra.mxu0 %v1212
  %1314 = vmatprep.subr.bf16.mxu0 0
  %1315 = vmatpush1.bf16.msra.mxu0 %v1213
  %1316 = vmatprep.subr.bf16.mxu0 0
  %1317 = vmatpush1.bf16.msra.mxu0 %v1214
  %1318 = vmatprep.subr.bf16.mxu0 0
  %1319 = vmatpush1.bf16.msra.mxu0 %v1215
  %1320 = vmatprep.mubr.bf16.mxu0 %v1051
  %1321 = vmatmul.mubr.bf16.gmra.mrb[0].mxu0 %v1050
  %v1322 = vpop.f32.mrb[0].mxu0
  %v1323 = vadd.f32 %v1283, %v1322
  %v1324 = vpop.f32.mrb[0].mxu0
  %v1325 = vpop.f32.mrb[0].mxu0
  %v1326 = vpop.f32.mrb[0].mxu0
  %1327 = vdwg.mxu0
  %v1328 = vsel %vm404, %v1323, 0.0
  %v1329 = vrot.slane %v1328, 4
  %v1330 = vadd.f32 %v1328, %v1329
  %v1331 = vrot.slane %v1330, 2
  %v1332 = vadd.f32 %v1330, %v1331
  %v1333 = vrot.slane %v1332, 1
  %v1334 = vadd.f32 %v1332, %v1333
  %v1335 = vmul.f32 %v1334, %v412
  %v1336 = vsub.f32 %v1323, %v1335
  %v1337 = vmul.f32 %v1336, %v1336
  %v1338 = vsel %vm404, %v1337, 0.0
  %v1339 = vrot.slane %v1338, 4
  %v1340 = vadd.f32 %v1338, %v1339
  %v1341 = vrot.slane %v1340, 2
  %v1342 = vadd.f32 %v1340, %v1341
  %v1343 = vrot.slane %v1342, 1
  %v1344 = vadd.f32 %v1342, %v1343
  %v1345 = vmul.f32 %v1344, %v412
  %v1346 = vadd.f32 %v1345, 1e-05
  %v1347 = vrsqrt.pop %v1346
  %v1348 = vmul.f32 %v1336, %v1347
  %v1349 = vmul.f32 %v1348, %v430
  %v1350 = vadd.f32 %v1349, %v435
  %v1351 = vmax.f32 %v1350, 0.0
  %v1352 = vpack.c.bf16 %v1351, %v1351
  %v1353 = vld [vmem:[%s2] sm:$0xf]
  %v1354 = vld [vmem:[%s2 + $0x4] sm:$0xf]
  %v1355 = vld [vmem:[%s2 + $0x8] sm:$0xf]
  %v1356 = vld [vmem:[%s2 + $0xc] sm:$0xf]
  %v1357 = vld [vmem:[%s2 + $0x10] sm:$0xf]
  %v1358 = vld [vmem:[%s2 + $0x14] sm:$0xf]
  %v1359 = vld [vmem:[%s2 + $0x18] sm:$0xf]
  %v1360 = vld [vmem:[%s2 + $0x1c] sm:$0xf]
  %v1361 = vld [vmem:[%s2 + $0x20] sm:$0xf]
  %v1362 = vld [vmem:[%s2 + $0x24] sm:$0xf]
  %v1363 = vld [vmem:[%s2 + $0x28] sm:$0xf]
  %v1364 = vld [vmem:[%s2 + $0x2c] sm:$0xf]
  %v1365 = vld [vmem:[%s2 + $0x30] sm:$0xf]
  %v1366 = vld [vmem:[%s2 + $0x34] sm:$0xf]
  %v1367 = vld [vmem:[%s2 + $0x38] sm:$0xf]
  %v1368 = vld [vmem:[%s2 + $0x3c] sm:$0xf]
  %v1385 = vunpack.c.l.b16 %v1353
  %v1386 = vunpack.c.l.b16 %v1354
  %v1387 = vunpack.c.l.b16 %v1355
  %v1388 = vunpack.c.l.b16 %v1356
  %v1389 = vunpack.c.l.b16 %v1357
  %v1390 = vunpack.c.l.b16 %v1358
  %v1391 = vunpack.c.l.b16 %v1359
  %v1392 = vunpack.c.l.b16 %v1360
  %v1393 = vunpack.c.l.b16 %v1361
  %v1394 = vunpack.c.l.b16 %v1362
  %v1395 = vunpack.c.l.b16 %v1363
  %v1396 = vunpack.c.l.b16 %v1364
  %v1397 = vunpack.c.l.b16 %v1365
  %v1398 = vunpack.c.l.b16 %v1366
  %v1399 = vunpack.c.l.b16 %v1367
  %v1400 = vunpack.c.l.b16 %v1368
  %v1401 = vpack.c.b16 %v1386, %v1385
  %v1402 = vpack.c.b16 %v1388, %v1387
  %v1403 = vpack.c.b16 %v1390, %v1389
  %v1404 = vpack.c.b16 %v1392, %v1391
  %v1405 = vpack.c.b16 %v1394, %v1393
  %v1406 = vpack.c.b16 %v1396, %v1395
  %v1407 = vpack.c.b16 %v1398, %v1397
  %v1408 = vpack.c.b16 %v1400, %v1399
  %1417 = vmatprep.subr.bf16.mxu0 0
  %1418 = vmatpush1.bf16.msra.mxu0 %v1401
  %1419 = vmatprep.subr.bf16.mxu0 0
  %1420 = vmatpush1.bf16.msra.mxu0 %v1402
  %1421 = vmatprep.subr.bf16.mxu0 0
  %1422 = vmatpush1.bf16.msra.mxu0 %v1403
  %1423 = vmatprep.subr.bf16.mxu0 0
  %1424 = vmatpush1.bf16.msra.mxu0 %v1404
  %1425 = vmatprep.subr.bf16.mxu0 0
  %1426 = vmatpush1.bf16.msra.mxu0 %v1405
  %1427 = vmatprep.subr.bf16.mxu0 0
  %1428 = vmatpush1.bf16.msra.mxu0 %v1406
  %1429 = vmatprep.subr.bf16.mxu0 0
  %1430 = vmatpush1.bf16.msra.mxu0 %v1407
  %1431 = vmatprep.subr.bf16.mxu0 0
  %1432 = vmatpush1.bf16.msra.mxu0 %v1408
  %1433 = vmatprep.subr.bf16.mxu0 0
  %1434 = vmatpush1.bf16.msra.mxu0 0
  %1435 = vmatprep.subr.bf16.mxu0 0
  %1436 = vmatpush1.bf16.msra.mxu0 0
  %1437 = vmatprep.subr.bf16.mxu0 0
  %1438 = vmatpush1.bf16.msra.mxu0 0
  %1439 = vmatprep.subr.bf16.mxu0 0
  %1440 = vmatpush1.bf16.msra.mxu0 0
  %1441 = vmatprep.subr.bf16.mxu0 0
  %1442 = vmatpush1.bf16.msra.mxu0 0
  %1443 = vmatprep.subr.bf16.mxu0 0
  %1444 = vmatpush1.bf16.msra.mxu0 0
  %1445 = vmatprep.subr.bf16.mxu0 0
  %1446 = vmatpush1.bf16.msra.mxu0 0
  %1447 = vmatprep.subr.bf16.mxu0 0
  %1448 = vmatpush1.bf16.msra.mxu0 0
  %1449 = vmatprep.mubr.bf16.mxu0 0
  %1450 = vmatmul.mubr.bf16.gmra.mrb[0].mxu0 %v1352
  %v1451 = vpop.f32.mrb[0].mxu0
  %v1452 = vadd.f32 0.0, %v1451
  %v1453 = vpop.f32.mrb[0].mxu0
  %v1454 = vpop.f32.mrb[0].mxu0
  %v1455 = vpop.f32.mrb[0].mxu0
  %1456 = vdwg.mxu0
  %v1457 = vsel %vm404, %v1452, 0.0
  %v1458 = vrot.slane %v1457, 4
  %v1459 = vadd.f32 %v1457, %v1458
  %v1460 = vrot.slane %v1459, 2
  %v1461 = vadd.f32 %v1459, %v1460
  %v1462 = vrot.slane %v1461, 1
  %v1463 = vadd.f32 %v1461, %v1462
  %v1464 = vmul.f32 %v1463, %v412
  %v1465 = vsub.f32 %v1452, %v1464
  %v1466 = vmul.f32 %v1465, %v1465
  %v1467 = vsel %vm404, %v1466, 0.0
  %v1468 = vrot.slane %v1467, 4
  %v1469 = vadd.f32 %v1467, %v1468
  %v1470 = vrot.slane %v1469, 2
  %v1471 = vadd.f32 %v1469, %v1470
  %v1472 = vrot.slane %v1471, 1
  %v1473 = vadd.f32 %v1471, %v1472
  %v1474 = vmul.f32 %v1473, %v412
  %v1475 = vadd.f32 %v1474, 1e-05
  %v1476 = vrsqrt.pop %v1475
  %v1477 = vmul.f32 %v1465, %v1476
  %v1478 = vmul.f32 %v1477, %v567
  %v1479 = vadd.f32 %v1478, %v572
  %v1480 = vmax.f32 %v1479, 0.0
  %v1481 = vpack.c.bf16 %v1480, %v1480
  %v1482 = vld [vmem:[%s3] sm:$0xf]
  %v1483 = vld [vmem:[%s3 + $0x4] sm:$0xf]
  %v1484 = vld [vmem:[%s3 + $0x8] sm:$0xf]
  %v1485 = vld [vmem:[%s3 + $0xc] sm:$0xf]
  %v1486 = vld [vmem:[%s3 + $0x10] sm:$0xf]
  %v1487 = vld [vmem:[%s3 + $0x14] sm:$0xf]
  %v1488 = vld [vmem:[%s3 + $0x18] sm:$0xf]
  %v1489 = vld [vmem:[%s3 + $0x1c] sm:$0xf]
  %v1490 = vld [vmem:[%s3 + $0x20] sm:$0xf]
  %v1491 = vld [vmem:[%s3 + $0x24] sm:$0xf]
  %v1492 = vld [vmem:[%s3 + $0x28] sm:$0xf]
  %v1493 = vld [vmem:[%s3 + $0x2c] sm:$0xf]
  %v1494 = vld [vmem:[%s3 + $0x30] sm:$0xf]
  %v1495 = vld [vmem:[%s3 + $0x34] sm:$0xf]
  %v1496 = vld [vmem:[%s3 + $0x38] sm:$0xf]
  %v1497 = vld [vmem:[%s3 + $0x3c] sm:$0xf]
  %v1514 = vunpack.c.l.b16 %v1482
  %v1515 = vunpack.c.l.b16 %v1483
  %v1516 = vunpack.c.l.b16 %v1484
  %v1517 = vunpack.c.l.b16 %v1485
  %v1518 = vunpack.c.l.b16 %v1486
  %v1519 = vunpack.c.l.b16 %v1487
  %v1520 = vunpack.c.l.b16 %v1488
  %v1521 = vunpack.c.l.b16 %v1489
  %v1522 = vunpack.c.l.b16 %v1490
  %v1523 = vunpack.c.l.b16 %v1491
  %v1524 = vunpack.c.l.b16 %v1492
  %v1525 = vunpack.c.l.b16 %v1493
  %v1526 = vunpack.c.l.b16 %v1494
  %v1527 = vunpack.c.l.b16 %v1495
  %v1528 = vunpack.c.l.b16 %v1496
  %v1529 = vunpack.c.l.b16 %v1497
  %v1530 = vpack.c.b16 %v1515, %v1514
  %v1531 = vpack.c.b16 %v1517, %v1516
  %v1532 = vpack.c.b16 %v1519, %v1518
  %v1533 = vpack.c.b16 %v1521, %v1520
  %v1534 = vpack.c.b16 %v1523, %v1522
  %v1535 = vpack.c.b16 %v1525, %v1524
  %v1536 = vpack.c.b16 %v1527, %v1526
  %v1537 = vpack.c.b16 %v1529, %v1528
  %1546 = vmatprep.subr.bf16.mxu0 0
  %1547 = vmatpush1.bf16.msra.mxu0 %v1530
  %1548 = vmatprep.subr.bf16.mxu0 0
  %1549 = vmatpush1.bf16.msra.mxu0 %v1531
  %1550 = vmatprep.subr.bf16.mxu0 0
  %1551 = vmatpush1.bf16.msra.mxu0 %v1532
  %1552 = vmatprep.subr.bf16.mxu0 0
  %1553 = vmatpush1.bf16.msra.mxu0 %v1533
  %1554 = vmatprep.subr.bf16.mxu0 0
  %1555 = vmatpush1.bf16.msra.mxu0 %v1534
  %1556 = vmatprep.subr.bf16.mxu0 0
  %1557 = vmatpush1.bf16.msra.mxu0 %v1535
  %1558 = vmatprep.subr.bf16.mxu0 0
  %1559 = vmatpush1.bf16.msra.mxu0 %v1536
  %1560 = vmatprep.subr.bf16.mxu0 0
  %1561 = vmatpush1.bf16.msra.mxu0 %v1537
  %1562 = vmatprep.subr.bf16.mxu0 0
  %1563 = vmatpush1.bf16.msra.mxu0 0
  %1564 = vmatprep.subr.bf16.mxu0 0
  %1565 = vmatpush1.bf16.msra.mxu0 0
  %1566 = vmatprep.subr.bf16.mxu0 0
  %1567 = vmatpush1.bf16.msra.mxu0 0
  %1568 = vmatprep.subr.bf16.mxu0 0
  %1569 = vmatpush1.bf16.msra.mxu0 0
  %1570 = vmatprep.subr.bf16.mxu0 0
  %1571 = vmatpush1.bf16.msra.mxu0 0
  %1572 = vmatprep.subr.bf16.mxu0 0
  %1573 = vmatpush1.bf16.msra.mxu0 0
  %1574 = vmatprep.subr.bf16.mxu0 0
  %1575 = vmatpush1.bf16.msra.mxu0 0
  %1576 = vmatprep.subr.bf16.mxu0 0
  %1577 = vmatpush1.bf16.msra.mxu0 0
  %1578 = vmatprep.mubr.bf16.mxu0 0
  %1579 = vmatmul.mubr.bf16.gmra.mrb[0].mxu0 %v1481
  %v1580 = vpop.f32.mrb[0].mxu0
  %v1581 = vadd.f32 0.0, %v1580
  %v1582 = vpop.f32.mrb[0].mxu0
  %v1583 = vpop.f32.mrb[0].mxu0
  %v1584 = vpop.f32.mrb[0].mxu0
  %1585 = vdwg.mxu0
  %v1586 = vsel %vm404, %v1581, 0.0
  %v1587 = vrot.slane %v1586, 4
  %v1588 = vadd.f32 %v1586, %v1587
  %v1589 = vrot.slane %v1588, 2
  %v1590 = vadd.f32 %v1588, %v1589
  %v1591 = vrot.slane %v1590, 1
  %v1592 = vadd.f32 %v1590, %v1591
  %v1593 = vmul.f32 %v1592, %v412
  %v1594 = vsub.f32 %v1581, %v1593
  %v1595 = vmul.f32 %v1594, %v1594
  %v1596 = vsel %vm404, %v1595, 0.0
  %v1597 = vrot.slane %v1596, 4
  %v1598 = vadd.f32 %v1596, %v1597
  %v1599 = vrot.slane %v1598, 2
  %v1600 = vadd.f32 %v1598, %v1599
  %v1601 = vrot.slane %v1600, 1
  %v1602 = vadd.f32 %v1600, %v1601
  %v1603 = vmul.f32 %v1602, %v412
  %v1604 = vadd.f32 %v1603, 1e-05
  %v1605 = vrsqrt.pop %v1604
  %v1606 = vmul.f32 %v1594, %v1605
  %v1607 = vmul.f32 %v1606, %v704
  %v1608 = vadd.f32 %v1607, %v709
  %v1609 = vpack.c.bf16 %v1608, %v1608
  %v1610 = vld [vmem:[%s4] sm:$0xf]
  %v1611 = vld [vmem:[%s4 + $0x4] sm:$0xf]
  %v1612 = vld [vmem:[%s4 + $0x8] sm:$0xf]
  %v1613 = vld [vmem:[%s4 + $0xc] sm:$0xf]
  %v1614 = vld [vmem:[%s4 + $0x10] sm:$0xf]
  %v1615 = vld [vmem:[%s4 + $0x14] sm:$0xf]
  %v1616 = vld [vmem:[%s4 + $0x18] sm:$0xf]
  %v1617 = vld [vmem:[%s4 + $0x1c] sm:$0xf]
  %v1618 = vld [vmem:[%s4 + $0x20] sm:$0xf]
  %v1619 = vld [vmem:[%s4 + $0x24] sm:$0xf]
  %v1620 = vld [vmem:[%s4 + $0x28] sm:$0xf]
  %v1621 = vld [vmem:[%s4 + $0x2c] sm:$0xf]
  %v1622 = vld [vmem:[%s4 + $0x30] sm:$0xf]
  %v1623 = vld [vmem:[%s4 + $0x34] sm:$0xf]
  %v1624 = vld [vmem:[%s4 + $0x38] sm:$0xf]
  %v1625 = vld [vmem:[%s4 + $0x3c] sm:$0xf]
  %v1642 = vunpack.c.l.b16 %v1610
  %v1643 = vunpack.c.l.b16 %v1611
  %v1644 = vunpack.c.l.b16 %v1612
  %v1645 = vunpack.c.l.b16 %v1613
  %v1646 = vunpack.c.l.b16 %v1614
  %v1647 = vunpack.c.l.b16 %v1615
  %v1648 = vunpack.c.l.b16 %v1616
  %v1649 = vunpack.c.l.b16 %v1617
  %v1650 = vunpack.c.l.b16 %v1618
  %v1651 = vunpack.c.l.b16 %v1619
  %v1652 = vunpack.c.l.b16 %v1620
  %v1653 = vunpack.c.l.b16 %v1621
  %v1654 = vunpack.c.l.b16 %v1622
  %v1655 = vunpack.c.l.b16 %v1623
  %v1656 = vunpack.c.l.b16 %v1624
  %v1657 = vunpack.c.l.b16 %v1625
  %v1658 = vpack.c.b16 %v1643, %v1642
  %v1659 = vpack.c.b16 %v1645, %v1644
  %v1660 = vpack.c.b16 %v1647, %v1646
  %v1661 = vpack.c.b16 %v1649, %v1648
  %v1662 = vpack.c.b16 %v1651, %v1650
  %v1663 = vpack.c.b16 %v1653, %v1652
  %v1664 = vpack.c.b16 %v1655, %v1654
  %v1665 = vpack.c.b16 %v1657, %v1656
  %1674 = vmatprep.subr.bf16.mxu0 0
  %1675 = vmatpush1.bf16.msra.mxu0 %v1658
  %1676 = vmatprep.subr.bf16.mxu0 0
  %1677 = vmatpush1.bf16.msra.mxu0 %v1659
  %1678 = vmatprep.subr.bf16.mxu0 0
  %1679 = vmatpush1.bf16.msra.mxu0 %v1660
  %1680 = vmatprep.subr.bf16.mxu0 0
  %1681 = vmatpush1.bf16.msra.mxu0 %v1661
  %1682 = vmatprep.subr.bf16.mxu0 0
  %1683 = vmatpush1.bf16.msra.mxu0 %v1662
  %1684 = vmatprep.subr.bf16.mxu0 0
  %1685 = vmatpush1.bf16.msra.mxu0 %v1663
  %1686 = vmatprep.subr.bf16.mxu0 0
  %1687 = vmatpush1.bf16.msra.mxu0 %v1664
  %1688 = vmatprep.subr.bf16.mxu0 0
  %1689 = vmatpush1.bf16.msra.mxu0 %v1665
  %1690 = vmatprep.subr.bf16.mxu0 0
  %1691 = vmatpush1.bf16.msra.mxu0 0
  %1692 = vmatprep.subr.bf16.mxu0 0
  %1693 = vmatpush1.bf16.msra.mxu0 0
  %1694 = vmatprep.subr.bf16.mxu0 0
  %1695 = vmatpush1.bf16.msra.mxu0 0
  %1696 = vmatprep.subr.bf16.mxu0 0
  %1697 = vmatpush1.bf16.msra.mxu0 0
  %1698 = vmatprep.subr.bf16.mxu0 0
  %1699 = vmatpush1.bf16.msra.mxu0 0
  %1700 = vmatprep.subr.bf16.mxu0 0
  %1701 = vmatpush1.bf16.msra.mxu0 0
  %1702 = vmatprep.subr.bf16.mxu0 0
  %1703 = vmatpush1.bf16.msra.mxu0 0
  %1704 = vmatprep.subr.bf16.mxu0 0
  %1705 = vmatpush1.bf16.msra.mxu0 0
  %1706 = vmatprep.mubr.bf16.mxu0 0
  %1707 = vmatmul.mubr.bf16.gmra.mrb[0].mxu0 %v1609
  %v1708 = vpop.f32.mrb[0].mxu0
  %v1709 = vadd.f32 0.0, %v1708
  %v1710 = vpop.f32.mrb[0].mxu0
  %v1711 = vpop.f32.mrb[0].mxu0
  %v1712 = vpop.f32.mrb[0].mxu0
  %1713 = vdwg.mxu0
  %v1714 = vsel %vm404, %v1709, 0.0
  %v1715 = vrot.slane %v1714, 4
  %v1716 = vadd.f32 %v1714, %v1715
  %v1717 = vrot.slane %v1716, 2
  %v1718 = vadd.f32 %v1716, %v1717
  %v1719 = vrot.slane %v1718, 1
  %v1720 = vadd.f32 %v1718, %v1719
  %v1721 = vmul.f32 %v1720, %v412
  %v1722 = vsub.f32 %v1709, %v1721
  %v1723 = vmul.f32 %v1722, %v1722
  %v1724 = vsel %vm404, %v1723, 0.0
  %v1725 = vrot.slane %v1724, 4
  %v1726 = vadd.f32 %v1724, %v1725
  %v1727 = vrot.slane %v1726, 2
  %v1728 = vadd.f32 %v1726, %v1727
  %v1729 = vrot.slane %v1728, 1
  %v1730 = vadd.f32 %v1728, %v1729
  %v1731 = vmul.f32 %v1730, %v412
  %v1732 = vadd.f32 %v1731, 1e-05
  %v1733 = vrsqrt.pop %v1732
  %v1734 = vmul.f32 %v1722, %v1733
  %v1735 = vmul.f32 %v1734, %v840
  %v1736 = vadd.f32 %v1735, %v845
  %v1737 = vmax.f32 %v1736, 0.0
  %v1738 = vpack.c.bf16 %v1737, %v1737
  %v1739 = vld [vmem:[%s5] sm:$0xf]
  %v1740 = vld [vmem:[%s5 + $0x4] sm:$0xf]
  %v1741 = vld [vmem:[%s5 + $0x8] sm:$0xf]
  %v1742 = vld [vmem:[%s5 + $0xc] sm:$0xf]
  %v1743 = vld [vmem:[%s5 + $0x10] sm:$0xf]
  %v1744 = vld [vmem:[%s5 + $0x14] sm:$0xf]
  %v1745 = vld [vmem:[%s5 + $0x18] sm:$0xf]
  %v1746 = vld [vmem:[%s5 + $0x1c] sm:$0xf]
  %v1747 = vld [vmem:[%s5 + $0x20] sm:$0xf]
  %v1748 = vld [vmem:[%s5 + $0x24] sm:$0xf]
  %v1749 = vld [vmem:[%s5 + $0x28] sm:$0xf]
  %v1750 = vld [vmem:[%s5 + $0x2c] sm:$0xf]
  %v1751 = vld [vmem:[%s5 + $0x30] sm:$0xf]
  %v1752 = vld [vmem:[%s5 + $0x34] sm:$0xf]
  %v1753 = vld [vmem:[%s5 + $0x38] sm:$0xf]
  %v1754 = vld [vmem:[%s5 + $0x3c] sm:$0xf]
  %v1771 = vunpack.c.l.b16 %v1739
  %v1772 = vunpack.c.l.b16 %v1740
  %v1773 = vunpack.c.l.b16 %v1741
  %v1774 = vunpack.c.l.b16 %v1742
  %v1775 = vunpack.c.l.b16 %v1743
  %v1776 = vunpack.c.l.b16 %v1744
  %v1777 = vunpack.c.l.b16 %v1745
  %v1778 = vunpack.c.l.b16 %v1746
  %v1779 = vunpack.c.l.b16 %v1747
  %v1780 = vunpack.c.l.b16 %v1748
  %v1781 = vunpack.c.l.b16 %v1749
  %v1782 = vunpack.c.l.b16 %v1750
  %v1783 = vunpack.c.l.b16 %v1751
  %v1784 = vunpack.c.l.b16 %v1752
  %v1785 = vunpack.c.l.b16 %v1753
  %v1786 = vunpack.c.l.b16 %v1754
  %v1787 = vpack.c.b16 %v1772, %v1771
  %v1788 = vpack.c.b16 %v1774, %v1773
  %v1789 = vpack.c.b16 %v1776, %v1775
  %v1790 = vpack.c.b16 %v1778, %v1777
  %v1791 = vpack.c.b16 %v1780, %v1779
  %v1792 = vpack.c.b16 %v1782, %v1781
  %v1793 = vpack.c.b16 %v1784, %v1783
  %v1794 = vpack.c.b16 %v1786, %v1785
  %1803 = vmatprep.subr.bf16.mxu0 0
  %1804 = vmatpush1.bf16.msra.mxu0 %v1787
  %1805 = vmatprep.subr.bf16.mxu0 0
  %1806 = vmatpush1.bf16.msra.mxu0 %v1788
  %1807 = vmatprep.subr.bf16.mxu0 0
  %1808 = vmatpush1.bf16.msra.mxu0 %v1789
  %1809 = vmatprep.subr.bf16.mxu0 0
  %1810 = vmatpush1.bf16.msra.mxu0 %v1790
  %1811 = vmatprep.subr.bf16.mxu0 0
  %1812 = vmatpush1.bf16.msra.mxu0 %v1791
  %1813 = vmatprep.subr.bf16.mxu0 0
  %1814 = vmatpush1.bf16.msra.mxu0 %v1792
  %1815 = vmatprep.subr.bf16.mxu0 0
  %1816 = vmatpush1.bf16.msra.mxu0 %v1793
  %1817 = vmatprep.subr.bf16.mxu0 0
  %1818 = vmatpush1.bf16.msra.mxu0 %v1794
  %1819 = vmatprep.subr.bf16.mxu0 0
  %1820 = vmatpush1.bf16.msra.mxu0 0
  %1821 = vmatprep.subr.bf16.mxu0 0
  %1822 = vmatpush1.bf16.msra.mxu0 0
  %1823 = vmatprep.subr.bf16.mxu0 0
  %1824 = vmatpush1.bf16.msra.mxu0 0
  %1825 = vmatprep.subr.bf16.mxu0 0
  %1826 = vmatpush1.bf16.msra.mxu0 0
  %1827 = vmatprep.subr.bf16.mxu0 0
  %1828 = vmatpush1.bf16.msra.mxu0 0
  %1829 = vmatprep.subr.bf16.mxu0 0
  %1830 = vmatpush1.bf16.msra.mxu0 0
  %1831 = vmatprep.subr.bf16.mxu0 0
  %1832 = vmatpush1.bf16.msra.mxu0 0
  %1833 = vmatprep.subr.bf16.mxu0 0
  %1834 = vmatpush1.bf16.msra.mxu0 0
  %1835 = vmatprep.mubr.bf16.mxu0 0
  %1836 = vmatmul.mubr.bf16.gmra.mrb[0].mxu0 %v1738
  %v1837 = vpop.f32.mrb[0].mxu0
  %v1838 = vadd.f32 %v869, %v1837
  %v1839 = vpop.f32.mrb[0].mxu0
  %v1840 = vpop.f32.mrb[0].mxu0
  %v1841 = vpop.f32.mrb[0].mxu0
  %1842 = vdwg.mxu0
  %s1843 = scalar_lea.vmem %s9, 2
  %1844 = vst [vmem:[%s1843] sm:$0x3] %v1608
  %s1845 = scalar_lea.vmem %s10, 2
  %1846 = vst [vmem:[%s1845] sm:$0x3] %v1838
  // Predicated region
  $region38: #{simsiam_forward.3} parent=0 // pred_check
    _
  $region39: #{simsiam_forward.3} parent=0 // pred_check_branch
    %1848 = sbr.rel (0) target = $region41
  $region40: #{simsiam_forward.3} parent=0 // pred_region
    _
  $region41: #{simsiam_forward.3} parent=0 // pred_fallthru
    _
  // Predicated region
  $region42: #{simsiam_forward.3} parent=0 // pred_check
    _
  $region43: #{simsiam_forward.3} parent=0 // pred_check_branch
    %1850 = sbr.rel (0) target = $region45
  $region44: #{simsiam_forward.3} parent=0 // pred_region
    _
  $region45: #{simsiam_forward.3} parent=0 // pred_fallthru
    _
  // Predicated region
  $region46: #{simsiam_forward.3} parent=0 // pred_check
    _
  $region47: #{simsiam_forward.3} parent=0 // pred_check_branch
    %1852 = sbr.rel (0) target = $region49
  $region48: #{simsiam_forward.3} parent=0 // pred_region
    _
  $region49: #{simsiam_forward.3} parent=0 // pred_fallthru
    _
  // Predicated region
  $region50: #{simsiam_forward.3} parent=0 // pred_check
    _
  $region51: #{simsiam_forward.3} parent=0 // pred_check_branch
    %1854 = sbr.rel (0) target = $region53
  $region52: #{simsiam_forward.3} parent=0 // pred_region
    _
  $region53: #{simsiam_forward.3} parent=0 // pred_fallthru
    _

</llo_original>
